<compile_context>
chip_gen: v7x
topology: tpu7x:2x2x1
jax: 0.10.0
libtpu: 0.0.40
codegen_flags: <defaults>
</compile_context>

<pallas_src>
import jax
import jax.numpy as jnp
from jax import lax
from jax.experimental import pallas as pl
from jax.experimental.pallas import tpu as pltpu

LANE = 128  # TPU lane width; all three gates are packed into one lane block


def gru_kernel(tok_ref, wtok_ref, h0_ref, whh_ref, gib_ref, bhn_ref,
               wdec_ref, bdec_ref, out_ref, hN_ref):
    """Fused embedding-fold + packed-gate GRU recurrence + deferred decoder.

    tok_ref : (T*B, 1) int32   time-major token ids
    wtok_ref: (V, L)           emb @ W_ih, gate g at lanes [g*H, (g+1)*H)
    h0_ref  : (B, L)           initial hidden state, lanes >= H are zero
    whh_ref : (L, L)           recurrent weights, rows >= H zero, gate cols packed
    gib_ref : (1, L)           b_ih (all gates) + b_hr/b_hz at r/z lanes
    bhn_ref : (1, L)           b_hn pre-rolled to lanes [0, H)
    wdec_ref: (L, L)           decoder weights, rows >= H zero, cols >= O zero
    bdec_ref: (1, L)           decoder bias, lanes >= O zero
    out_ref : (T*B, L)         lane-dense logits (time-major, padded)
    hN_ref  : (B, H)           final hidden state
    """
    TB = tok_ref.shape[0]
    V = wtok_ref.shape[0]
    B, L = h0_ref.shape
    H = hN_ref.shape[1]
    T = TB // B
    f32 = jnp.float32
    nshift = (L - 2 * H) % L          # brings n-gate lanes [2H,3H) down to [0,H)
    zshift = (L - H) % L              # brings z-gate lanes [H,2H)  down to [0,H)

    # ---- Fused embedding + input projection: one MXU matmul for all T steps ----
    tok = tok_ref[...]                                                     # (TB, 1)
    onehot = (tok == lax.broadcasted_iota(jnp.int32, (TB, V), 1)).astype(f32)
    gi_all = jnp.dot(onehot, wtok_ref[...],
                     preferred_element_type=f32) + gib_ref[...]            # (TB, L)
    # n-gate pre-activation pre-rolled to the hidden lanes [0, H) (off the chain).
    gi_n_all = pltpu.roll(gi_all, nshift, axis=1)                          # (TB, L)

    w_hh = whh_ref[...]                                                    # (L, L)
    b_hn = bhn_ref[...]                                                    # (1, L)
    h = h0_ref[...]                                                        # (B, L)

    # ---- Serial recurrence, fully unrolled (T static), 1 MXU tile per step ----
    # PyTorch gate order r|z|n; n = tanh(W_in x + b_in + r*(W_hn h + b_hn)).
    hs = []
    for t in range(T):
        gi = gi_all[t * B:(t + 1) * B, :]                                  # (B, L)
        gi_n = gi_n_all[t * B:(t + 1) * B, :]
        gh = jnp.dot(h, w_hh, preferred_element_type=f32)                  # (B, L)
        rz = jax.nn.sigmoid(gi + gh)                  # r at [0,H), z at [H,2H)
        gh_n = pltpu.roll(gh, nshift, axis=1) + b_hn  # (W_hn h + b_hn) at [0,H)
        n = jnp.tanh(gi_n + rz * gh_n)                # n at [0,H)  (rz[0:H) == r)
        z = pltpu.roll(rz, zshift, axis=1)            # z at [0,H)
        h = (1.0 - z) * n + z * h                     # valid at [0,H); pads bounded
        hs.append(h)

    hN_ref[...] = h[:, :H]

    # ---- Deferred decoder: hidden history kept in vregs, one matmul, one store ----
    hs_tm = jnp.concatenate(hs, axis=0)                                    # (TB, L)
    out_ref[...] = (jnp.dot(hs_tm, wdec_ref[...],
                            preferred_element_type=f32) + bdec_ref[...])   # (TB, L)


def pack_gru_params(params):
    """Pack PyTorch-layout GRU params into the packed-gate, lane-padded layout.

    Invariant: every padded lane/row below is EXACTLY zero (the kernel relies
    on it to keep padded hidden lanes from reaching any output).
    """
    f32 = jnp.float32
    emb = params["emb"].astype(f32)          # (V, H)
    w_ih_t = params["w_ih_t"].astype(f32)    # (H, 3H)  transpose of weight_ih_l0
    w_hh_t = params["w_hh_t"].astype(f32)    # (H, 3H)  transpose of weight_hh_l0
    b_ih = params["b_ih"].astype(f32)        # (1, 3H)
    b_hh = params["b_hh"].astype(f32)        # (1, 3H)
    w_dec_t = params["w_dec_t"].astype(f32)  # (H, O)   transpose of decoder weight
    b_dec = params["b_dec"].astype(f32)      # (1, O)

    V, H = emb.shape
    O = w_dec_t.shape[1]
    L = LANE
    # Packed-gate layout needs all three gates inside one lane block.
    assert 3 * H <= L, "gate packing requires 3*hidden <= 128"  # TODO(synk): multi-block fallback
    assert O <= L

    # Embedding folded into the input projection (exact f32 fold).
    w_tok_raw = jnp.dot(emb, w_ih_t, precision=jax.lax.Precision.HIGHEST)   # (V, 3H)
    w_tok = jnp.zeros((V, L), f32).at[:, :3 * H].set(w_tok_raw)

    # Per-token bias: b_ih for all gates + hoisted b_hr / b_hz (NOT b_hn).
    gi_bias = jnp.zeros((1, L), f32).at[:, :3 * H].set(b_ih)
    gi_bias = gi_bias.at[:, :2 * H].add(b_hh[:, :2 * H])

    # b_hn pre-rolled to hidden-lane alignment [0, H).
    b_hn = jnp.zeros((1, L), f32).at[:, :H].set(b_hh[:, 2 * H:3 * H])

    # Recurrent weights: rows >= H zero, gate g in cols [g*H, (g+1)*H), cols >= 3H zero.
    w_hh_p = jnp.zeros((L, L), f32).at[:H, :3 * H].set(w_hh_t)

    # Decoder: rows >= H zero, cols >= O zero (lane-dense padded output).
    w_dec_p = jnp.zeros((L, L), f32).at[:H, :O].set(w_dec_t)
    b_dec_p = jnp.zeros((1, L), f32).at[:, :O].set(b_dec)

    return {"w_tok": w_tok, "w_hh_p": w_hh_p, "gi_bias": gi_bias,
            "b_hn": b_hn, "w_dec_p": w_dec_p, "b_dec_p": b_dec_p}


def _full_spec(shape):
    nd = len(shape)
    return pl.BlockSpec(shape, lambda *_, _nd=nd: (0,) * _nd)


def _gru_model_forward(tokens, hidden, packed, *, out_size):
    """Mirrors GRU.forward: returns (output (B, T, O), (hidden (1, B, H),))."""
    B, T = tokens.shape
    H = hidden.shape[-1]
    L = packed["w_hh_p"].shape[0]
    O = out_size

    # Tiny deliberate wrapper preps (see header comment).
    tok_tm = jnp.transpose(tokens.astype(jnp.int32), (1, 0)).reshape(T * B, 1)
    h0_p = jnp.zeros((B, L), jnp.float32).at[:, :H].set(hidden[0])

    ins = (tok_tm, packed["w_tok"], h0_p, packed["w_hh_p"], packed["gi_bias"],
           packed["b_hn"], packed["w_dec_p"], packed["b_dec_p"])

    out_flat, h_final = pl.pallas_call(
        gru_kernel,
        out_shape=(jax.ShapeDtypeStruct((T * B, L), jnp.float32),
                   jax.ShapeDtypeStruct((B, H), jnp.float32)),
        in_specs=[_full_spec(a.shape) for a in ins],
        out_specs=(_full_spec((T * B, L)), _full_spec((B, H))),
    )(*ins)

    # One fused reshape/transpose/slice (8 KiB) -> (B, T, O) batch_first.
    output = jnp.transpose(out_flat.reshape(T, B, L), (1, 0, 2))[:, :, :O]
    return output, (h_final[None, :, :],)


gru_model_forward = jax.jit(_gru_model_forward, static_argnames=("out_size",))


def gru_reference(tokens, hidden, params):
    """Pure-JAX reference (unpadded math) for the correctness check."""
    x_emb = params["emb"][tokens]                    # (B, T, H)
    H = x_emb.shape[-1]
    h = hidden[0]
    outs = []
    for t in range(x_emb.shape[1]):
        x_t = x_emb[:, t, :]
        gi = x_t @ params["w_ih_t"] + params["b_ih"]
        gh = h @ params["w_hh_t"] + params["b_hh"]
        r = jax.nn.sigmoid(gi[:, :H] + gh[:, :H])
        z = jax.nn.sigmoid(gi[:, H:2 * H] + gh[:, H:2 * H])
        n = jnp.tanh(gi[:, 2 * H:] + r * gh[:, 2 * H:])
        h = (1.0 - z) * n + z * h
        outs.append(h @ params["w_dec_t"] + params["b_dec"])
    return jnp.stack(outs, axis=1), h[None]


if __name__ == "__main__":
    # Shapes consistent with the module: vocab (input_size)=48, hidden_size=32,
    # output_size=48, batch=2, seq=8, n_layers=1, unidirectional, dropout=0,
    # use_softmax=False.
    INPUT_SIZE, HIDDEN, OUTPUT_SIZE = 48, 32, 48
    B, T = 2, 8

    key = jax.random.PRNGKey(0)
    ks = jax.random.split(key, 9)
    bound = 1.0 / jnp.sqrt(HIDDEN)

    params = {
        "emb":     jax.random.normal(ks[0], (INPUT_SIZE, HIDDEN), jnp.float32),
        # nn.GRU weight_ih_l0 is (3H, H); we carry its transpose (H, 3H).
        "w_ih_t":  jax.random.uniform(ks[1], (HIDDEN, 3 * HIDDEN), jnp.float32, -bound, bound),
        "w_hh_t":  jax.random.uniform(ks[2], (HIDDEN, 3 * HIDDEN), jnp.float32, -bound, bound),
        "b_ih":    jax.random.uniform(ks[3], (1, 3 * HIDDEN), jnp.float32, -bound, bound),
        "b_hh":    jax.random.uniform(ks[4], (1, 3 * HIDDEN), jnp.float32, -bound, bound),
        # nn.Linear weight is (O, H); we carry its transpose (H, O).
        "w_dec_t": jax.random.uniform(ks[5], (HIDDEN, OUTPUT_SIZE), jnp.float32, -bound, bound),
        "b_dec":   jax.random.uniform(ks[6], (1, OUTPUT_SIZE), jnp.float32, -bound, bound),
    }

    tokens = jax.random.randint(ks[7], (B, T), 0, INPUT_SIZE)            # (B, T) ids
    hidden0 = jax.random.uniform(ks[8], (1, B, HIDDEN), jnp.float32)     # init_h_c()

    packed = pack_gru_params(params)

    out, (h_n,) = gru_model_forward(tokens, hidden0, packed, out_size=OUTPUT_SIZE)
    out, h_n = jax.block_until_ready((out, h_n))

    out_ref, h_ref = gru_reference(tokens, hidden0, params)
    assert out.shape == (B, T, OUTPUT_SIZE) and h_n.shape == (1, B, HIDDEN)
    assert jnp.allclose(out, out_ref, rtol=1e-4, atol=1e-5)
    assert jnp.allclose(h_n, h_ref, rtol=1e-4, atol=1e-5)

    print("KERNEL_OK")
</pallas_src>

<mosaic_0001>
module attributes {stable_mosaic.version = 11 : i64} {
  func.func @gru_kernel(%arg0: memref<16x1xi32, #tpu.memory_space<vmem>>, %arg1: memref<48x128xf32, #tpu.memory_space<vmem>>, %arg2: memref<2x128xf32, #tpu.memory_space<vmem>>, %arg3: memref<128x128xf32, #tpu.memory_space<vmem>>, %arg4: memref<1x128xf32, #tpu.memory_space<vmem>>, %arg5: memref<1x128xf32, #tpu.memory_space<vmem>>, %arg6: memref<128x128xf32, #tpu.memory_space<vmem>>, %arg7: memref<1x128xf32, #tpu.memory_space<vmem>>, %arg8: memref<16x128xf32, #tpu.memory_space<vmem>>, %arg9: memref<2x32xf32, #tpu.memory_space<vmem>>) attributes {dimension_semantics = [], scalar_prefetch = 0 : i64, scratch_operands = 0 : i64, tpu.core_type = #tpu.core_type<tc>} {
    %c0 = arith.constant 0 : index
    %c0_0 = arith.constant 0 : index
    %0 = vector.load %arg0[%c0, %c0_0] : memref<16x1xi32, #tpu.memory_space<vmem>>, vector<16x1xi32>
    %1 = tpu.iota {dimensions = array<i32: 1>} : vector<16x48xi32>
    %2 = vector.broadcast %0 : vector<16x1xi32> to vector<16x48xi32>
    %3 = arith.cmpi eq, %2, %1 : vector<16x48xi32>
    %4 = arith.extui %3 : vector<16x48xi1> to vector<16x48xi32>
    %5 = arith.sitofp %4 : vector<16x48xi32> to vector<16x48xf32>
    %c0_1 = arith.constant 0 : index
    %c0_2 = arith.constant 0 : index
    %6 = vector.load %arg1[%c0_1, %c0_2] : memref<48x128xf32, #tpu.memory_space<vmem>>, vector<48x128xf32>
    %cst = arith.constant dense<0.000000e+00> : vector<16x128xf32>
    %7 = tpu.matmul %5, %6, %cst {dimension_numbers = #tpu.dot_dimension_numbers<[1], [0], [0], [1], [0, 0, 1, 1], [], []>} : vector<16x48xf32>, vector<48x128xf32>, vector<16x128xf32> -> vector<16x128xf32>
    %c0_3 = arith.constant 0 : index
    %c0_4 = arith.constant 0 : index
    %8 = vector.load %arg4[%c0_3, %c0_4] : memref<1x128xf32, #tpu.memory_space<vmem>>, vector<1x128xf32>
    %9 = vector.broadcast %8 : vector<1x128xf32> to vector<16x128xf32>
    %10 = arith.addf %7, %9 : vector<16x128xf32>
    %c64_i32 = arith.constant 64 : i32
    %11 = tpu.dynamic_rotate %10 by %c64_i32 dim 1 : vector<16x128xf32>, i32 -> vector<16x128xf32>
    %c0_5 = arith.constant 0 : index
    %c0_6 = arith.constant 0 : index
    %12 = vector.load %arg3[%c0_5, %c0_6] : memref<128x128xf32, #tpu.memory_space<vmem>>, vector<128x128xf32>
    %c0_7 = arith.constant 0 : index
    %c0_8 = arith.constant 0 : index
    %13 = vector.load %arg5[%c0_7, %c0_8] : memref<1x128xf32, #tpu.memory_space<vmem>>, vector<1x128xf32>
    %c0_9 = arith.constant 0 : index
    %c0_10 = arith.constant 0 : index
    %14 = vector.load %arg2[%c0_9, %c0_10] : memref<2x128xf32, #tpu.memory_space<vmem>>, vector<2x128xf32>
    %15 = vector.extract_strided_slice %10 {offsets = [0, 0], sizes = [2, 128], strides = [1, 1]} : vector<16x128xf32> to vector<2x128xf32>
    %16 = vector.extract_strided_slice %11 {offsets = [0, 0], sizes = [2, 128], strides = [1, 1]} : vector<16x128xf32> to vector<2x128xf32>
    %cst_11 = arith.constant dense<0.000000e+00> : vector<2x128xf32>
    %17 = tpu.matmul %14, %12, %cst_11 {dimension_numbers = #tpu.dot_dimension_numbers<[1], [0], [0], [1], [0, 0, 1, 1], [], []>} : vector<2x128xf32>, vector<128x128xf32>, vector<2x128xf32> -> vector<2x128xf32>
    %18 = arith.addf %15, %17 : vector<2x128xf32>
    %19 = arith.negf %18 : vector<2x128xf32>
    %20 = math.exp %19 : vector<2x128xf32>
    %cst_12 = arith.constant 1.000000e+00 : f32
    %21 = vector.broadcast %cst_12 : f32 to vector<2x128xf32>
    %22 = arith.addf %21, %20 : vector<2x128xf32>
    %23 = arith.divf %21, %22 : vector<2x128xf32>
    %c64_i32_13 = arith.constant 64 : i32
    %24 = tpu.dynamic_rotate %17 by %c64_i32_13 dim 1 : vector<2x128xf32>, i32 -> vector<2x128xf32>
    %25 = vector.broadcast %13 : vector<1x128xf32> to vector<2x128xf32>
    %26 = arith.addf %24, %25 : vector<2x128xf32>
    %27 = arith.mulf %23, %26 : vector<2x128xf32>
    %28 = arith.addf %16, %27 : vector<2x128xf32>
    %29 = math.tanh %28 : vector<2x128xf32>
    %c96_i32 = arith.constant 96 : i32
    %30 = tpu.dynamic_rotate %23 by %c96_i32 dim 1 : vector<2x128xf32>, i32 -> vector<2x128xf32>
    %cst_14 = arith.constant 1.000000e+00 : f32
    %31 = vector.broadcast %cst_14 : f32 to vector<2x128xf32>
    %32 = arith.subf %31, %30 : vector<2x128xf32>
    %33 = arith.mulf %32, %29 : vector<2x128xf32>
    %34 = arith.mulf %30, %14 : vector<2x128xf32>
    %35 = arith.addf %33, %34 : vector<2x128xf32>
    %36 = vector.extract_strided_slice %10 {offsets = [2, 0], sizes = [2, 128], strides = [1, 1]} : vector<16x128xf32> to vector<2x128xf32>
    %37 = vector.extract_strided_slice %11 {offsets = [2, 0], sizes = [2, 128], strides = [1, 1]} : vector<16x128xf32> to vector<2x128xf32>
    %cst_15 = arith.constant dense<0.000000e+00> : vector<2x128xf32>
    %38 = tpu.matmul %35, %12, %cst_15 {dimension_numbers = #tpu.dot_dimension_numbers<[1], [0], [0], [1], [0, 0, 1, 1], [], []>} : vector<2x128xf32>, vector<128x128xf32>, vector<2x128xf32> -> vector<2x128xf32>
    %39 = arith.addf %36, %38 : vector<2x128xf32>
    %40 = arith.negf %39 : vector<2x128xf32>
    %41 = math.exp %40 : vector<2x128xf32>
    %cst_16 = arith.constant 1.000000e+00 : f32
    %42 = vector.broadcast %cst_16 : f32 to vector<2x128xf32>
    %43 = arith.addf %42, %41 : vector<2x128xf32>
    %44 = arith.divf %42, %43 : vector<2x128xf32>
    %c64_i32_17 = arith.constant 64 : i32
    %45 = tpu.dynamic_rotate %38 by %c64_i32_17 dim 1 : vector<2x128xf32>, i32 -> vector<2x128xf32>
    %46 = vector.broadcast %13 : vector<1x128xf32> to vector<2x128xf32>
    %47 = arith.addf %45, %46 : vector<2x128xf32>
    %48 = arith.mulf %44, %47 : vector<2x128xf32>
    %49 = arith.addf %37, %48 : vector<2x128xf32>
    %50 = math.tanh %49 : vector<2x128xf32>
    %c96_i32_18 = arith.constant 96 : i32
    %51 = tpu.dynamic_rotate %44 by %c96_i32_18 dim 1 : vector<2x128xf32>, i32 -> vector<2x128xf32>
    %cst_19 = arith.constant 1.000000e+00 : f32
    %52 = vector.broadcast %cst_19 : f32 to vector<2x128xf32>
    %53 = arith.subf %52, %51 : vector<2x128xf32>
    %54 = arith.mulf %53, %50 : vector<2x128xf32>
    %55 = arith.mulf %51, %35 : vector<2x128xf32>
    %56 = arith.addf %54, %55 : vector<2x128xf32>
    %57 = vector.extract_strided_slice %10 {offsets = [4, 0], sizes = [2, 128], strides = [1, 1]} : vector<16x128xf32> to vector<2x128xf32>
    %58 = vector.extract_strided_slice %11 {offsets = [4, 0], sizes = [2, 128], strides = [1, 1]} : vector<16x128xf32> to vector<2x128xf32>
    %cst_20 = arith.constant dense<0.000000e+00> : vector<2x128xf32>
    %59 = tpu.matmul %56, %12, %cst_20 {dimension_numbers = #tpu.dot_dimension_numbers<[1], [0], [0], [1], [0, 0, 1, 1], [], []>} : vector<2x128xf32>, vector<128x128xf32>, vector<2x128xf32> -> vector<2x128xf32>
    %60 = arith.addf %57, %59 : vector<2x128xf32>
    %61 = arith.negf %60 : vector<2x128xf32>
    %62 = math.exp %61 : vector<2x128xf32>
    %cst_21 = arith.constant 1.000000e+00 : f32
    %63 = vector.broadcast %cst_21 : f32 to vector<2x128xf32>
    %64 = arith.addf %63, %62 : vector<2x128xf32>
    %65 = arith.divf %63, %64 : vector<2x128xf32>
    %c64_i32_22 = arith.constant 64 : i32
    %66 = tpu.dynamic_rotate %59 by %c64_i32_22 dim 1 : vector<2x128xf32>, i32 -> vector<2x128xf32>
    %67 = vector.broadcast %13 : vector<1x128xf32> to vector<2x128xf32>
    %68 = arith.addf %66, %67 : vector<2x128xf32>
    %69 = arith.mulf %65, %68 : vector<2x128xf32>
    %70 = arith.addf %58, %69 : vector<2x128xf32>
    %71 = math.tanh %70 : vector<2x128xf32>
    %c96_i32_23 = arith.constant 96 : i32
    %72 = tpu.dynamic_rotate %65 by %c96_i32_23 dim 1 : vector<2x128xf32>, i32 -> vector<2x128xf32>
    %cst_24 = arith.constant 1.000000e+00 : f32
    %73 = vector.broadcast %cst_24 : f32 to vector<2x128xf32>
    %74 = arith.subf %73, %72 : vector<2x128xf32>
    %75 = arith.mulf %74, %71 : vector<2x128xf32>
    %76 = arith.mulf %72, %56 : vector<2x128xf32>
    %77 = arith.addf %75, %76 : vector<2x128xf32>
    %78 = vector.extract_strided_slice %10 {offsets = [6, 0], sizes = [2, 128], strides = [1, 1]} : vector<16x128xf32> to vector<2x128xf32>
    %79 = vector.extract_strided_slice %11 {offsets = [6, 0], sizes = [2, 128], strides = [1, 1]} : vector<16x128xf32> to vector<2x128xf32>
    %cst_25 = arith.constant dense<0.000000e+00> : vector<2x128xf32>
    %80 = tpu.matmul %77, %12, %cst_25 {dimension_numbers = #tpu.dot_dimension_numbers<[1], [0], [0], [1], [0, 0, 1, 1], [], []>} : vector<2x128xf32>, vector<128x128xf32>, vector<2x128xf32> -> vector<2x128xf32>
    %81 = arith.addf %78, %80 : vector<2x128xf32>
    %82 = arith.negf %81 : vector<2x128xf32>
    %83 = math.exp %82 : vector<2x128xf32>
    %cst_26 = arith.constant 1.000000e+00 : f32
    %84 = vector.broadcast %cst_26 : f32 to vector<2x128xf32>
    %85 = arith.addf %84, %83 : vector<2x128xf32>
    %86 = arith.divf %84, %85 : vector<2x128xf32>
    %c64_i32_27 = arith.constant 64 : i32
    %87 = tpu.dynamic_rotate %80 by %c64_i32_27 dim 1 : vector<2x128xf32>, i32 -> vector<2x128xf32>
    %88 = vector.broadcast %13 : vector<1x128xf32> to vector<2x128xf32>
    %89 = arith.addf %87, %88 : vector<2x128xf32>
    %90 = arith.mulf %86, %89 : vector<2x128xf32>
    %91 = arith.addf %79, %90 : vector<2x128xf32>
    %92 = math.tanh %91 : vector<2x128xf32>
    %c96_i32_28 = arith.constant 96 : i32
    %93 = tpu.dynamic_rotate %86 by %c96_i32_28 dim 1 : vector<2x128xf32>, i32 -> vector<2x128xf32>
    %cst_29 = arith.constant 1.000000e+00 : f32
    %94 = vector.broadcast %cst_29 : f32 to vector<2x128xf32>
    %95 = arith.subf %94, %93 : vector<2x128xf32>
    %96 = arith.mulf %95, %92 : vector<2x128xf32>
    %97 = arith.mulf %93, %77 : vector<2x128xf32>
    %98 = arith.addf %96, %97 : vector<2x128xf32>
    %99 = vector.extract_strided_slice %10 {offsets = [8, 0], sizes = [2, 128], strides = [1, 1]} : vector<16x128xf32> to vector<2x128xf32>
    %100 = vector.extract_strided_slice %11 {offsets = [8, 0], sizes = [2, 128], strides = [1, 1]} : vector<16x128xf32> to vector<2x128xf32>
    %cst_30 = arith.constant dense<0.000000e+00> : vector<2x128xf32>
    %101 = tpu.matmul %98, %12, %cst_30 {dimension_numbers = #tpu.dot_dimension_numbers<[1], [0], [0], [1], [0, 0, 1, 1], [], []>} : vector<2x128xf32>, vector<128x128xf32>, vector<2x128xf32> -> vector<2x128xf32>
    %102 = arith.addf %99, %101 : vector<2x128xf32>
    %103 = arith.negf %102 : vector<2x128xf32>
    %104 = math.exp %103 : vector<2x128xf32>
    %cst_31 = arith.constant 1.000000e+00 : f32
    %105 = vector.broadcast %cst_31 : f32 to vector<2x128xf32>
    %106 = arith.addf %105, %104 : vector<2x128xf32>
    %107 = arith.divf %105, %106 : vector<2x128xf32>
    %c64_i32_32 = arith.constant 64 : i32
    %108 = tpu.dynamic_rotate %101 by %c64_i32_32 dim 1 : vector<2x128xf32>, i32 -> vector<2x128xf32>
    %109 = vector.broadcast %13 : vector<1x128xf32> to vector<2x128xf32>
    %110 = arith.addf %108, %109 : vector<2x128xf32>
    %111 = arith.mulf %107, %110 : vector<2x128xf32>
    %112 = arith.addf %100, %111 : vector<2x128xf32>
    %113 = math.tanh %112 : vector<2x128xf32>
    %c96_i32_33 = arith.constant 96 : i32
    %114 = tpu.dynamic_rotate %107 by %c96_i32_33 dim 1 : vector<2x128xf32>, i32 -> vector<2x128xf32>
    %cst_34 = arith.constant 1.000000e+00 : f32
    %115 = vector.broadcast %cst_34 : f32 to vector<2x128xf32>
    %116 = arith.subf %115, %114 : vector<2x128xf32>
    %117 = arith.mulf %116, %113 : vector<2x128xf32>
    %118 = arith.mulf %114, %98 : vector<2x128xf32>
    %119 = arith.addf %117, %118 : vector<2x128xf32>
    %120 = vector.extract_strided_slice %10 {offsets = [10, 0], sizes = [2, 128], strides = [1, 1]} : vector<16x128xf32> to vector<2x128xf32>
    %121 = vector.extract_strided_slice %11 {offsets = [10, 0], sizes = [2, 128], strides = [1, 1]} : vector<16x128xf32> to vector<2x128xf32>
    %cst_35 = arith.constant dense<0.000000e+00> : vector<2x128xf32>
    %122 = tpu.matmul %119, %12, %cst_35 {dimension_numbers = #tpu.dot_dimension_numbers<[1], [0], [0], [1], [0, 0, 1, 1], [], []>} : vector<2x128xf32>, vector<128x128xf32>, vector<2x128xf32> -> vector<2x128xf32>
    %123 = arith.addf %120, %122 : vector<2x128xf32>
    %124 = arith.negf %123 : vector<2x128xf32>
    %125 = math.exp %124 : vector<2x128xf32>
    %cst_36 = arith.constant 1.000000e+00 : f32
    %126 = vector.broadcast %cst_36 : f32 to vector<2x128xf32>
    %127 = arith.addf %126, %125 : vector<2x128xf32>
    %128 = arith.divf %126, %127 : vector<2x128xf32>
    %c64_i32_37 = arith.constant 64 : i32
    %129 = tpu.dynamic_rotate %122 by %c64_i32_37 dim 1 : vector<2x128xf32>, i32 -> vector<2x128xf32>
    %130 = vector.broadcast %13 : vector<1x128xf32> to vector<2x128xf32>
    %131 = arith.addf %129, %130 : vector<2x128xf32>
    %132 = arith.mulf %128, %131 : vector<2x128xf32>
    %133 = arith.addf %121, %132 : vector<2x128xf32>
    %134 = math.tanh %133 : vector<2x128xf32>
    %c96_i32_38 = arith.constant 96 : i32
    %135 = tpu.dynamic_rotate %128 by %c96_i32_38 dim 1 : vector<2x128xf32>, i32 -> vector<2x128xf32>
    %cst_39 = arith.constant 1.000000e+00 : f32
    %136 = vector.broadcast %cst_39 : f32 to vector<2x128xf32>
    %137 = arith.subf %136, %135 : vector<2x128xf32>
    %138 = arith.mulf %137, %134 : vector<2x128xf32>
    %139 = arith.mulf %135, %119 : vector<2x128xf32>
    %140 = arith.addf %138, %139 : vector<2x128xf32>
    %141 = vector.extract_strided_slice %10 {offsets = [12, 0], sizes = [2, 128], strides = [1, 1]} : vector<16x128xf32> to vector<2x128xf32>
    %142 = vector.extract_strided_slice %11 {offsets = [12, 0], sizes = [2, 128], strides = [1, 1]} : vector<16x128xf32> to vector<2x128xf32>
    %cst_40 = arith.constant dense<0.000000e+00> : vector<2x128xf32>
    %143 = tpu.matmul %140, %12, %cst_40 {dimension_numbers = #tpu.dot_dimension_numbers<[1], [0], [0], [1], [0, 0, 1, 1], [], []>} : vector<2x128xf32>, vector<128x128xf32>, vector<2x128xf32> -> vector<2x128xf32>
    %144 = arith.addf %141, %143 : vector<2x128xf32>
    %145 = arith.negf %144 : vector<2x128xf32>
    %146 = math.exp %145 : vector<2x128xf32>
    %cst_41 = arith.constant 1.000000e+00 : f32
    %147 = vector.broadcast %cst_41 : f32 to vector<2x128xf32>
    %148 = arith.addf %147, %146 : vector<2x128xf32>
    %149 = arith.divf %147, %148 : vector<2x128xf32>
    %c64_i32_42 = arith.constant 64 : i32
    %150 = tpu.dynamic_rotate %143 by %c64_i32_42 dim 1 : vector<2x128xf32>, i32 -> vector<2x128xf32>
    %151 = vector.broadcast %13 : vector<1x128xf32> to vector<2x128xf32>
    %152 = arith.addf %150, %151 : vector<2x128xf32>
    %153 = arith.mulf %149, %152 : vector<2x128xf32>
    %154 = arith.addf %142, %153 : vector<2x128xf32>
    %155 = math.tanh %154 : vector<2x128xf32>
    %c96_i32_43 = arith.constant 96 : i32
    %156 = tpu.dynamic_rotate %149 by %c96_i32_43 dim 1 : vector<2x128xf32>, i32 -> vector<2x128xf32>
    %cst_44 = arith.constant 1.000000e+00 : f32
    %157 = vector.broadcast %cst_44 : f32 to vector<2x128xf32>
    %158 = arith.subf %157, %156 : vector<2x128xf32>
    %159 = arith.mulf %158, %155 : vector<2x128xf32>
    %160 = arith.mulf %156, %140 : vector<2x128xf32>
    %161 = arith.addf %159, %160 : vector<2x128xf32>
    %162 = vector.extract_strided_slice %10 {offsets = [14, 0], sizes = [2, 128], strides = [1, 1]} : vector<16x128xf32> to vector<2x128xf32>
    %163 = vector.extract_strided_slice %11 {offsets = [14, 0], sizes = [2, 128], strides = [1, 1]} : vector<16x128xf32> to vector<2x128xf32>
    %cst_45 = arith.constant dense<0.000000e+00> : vector<2x128xf32>
    %164 = tpu.matmul %161, %12, %cst_45 {dimension_numbers = #tpu.dot_dimension_numbers<[1], [0], [0], [1], [0, 0, 1, 1], [], []>} : vector<2x128xf32>, vector<128x128xf32>, vector<2x128xf32> -> vector<2x128xf32>
    %165 = arith.addf %162, %164 : vector<2x128xf32>
    %166 = arith.negf %165 : vector<2x128xf32>
    %167 = math.exp %166 : vector<2x128xf32>
    %cst_46 = arith.constant 1.000000e+00 : f32
    %168 = vector.broadcast %cst_46 : f32 to vector<2x128xf32>
    %169 = arith.addf %168, %167 : vector<2x128xf32>
    %170 = arith.divf %168, %169 : vector<2x128xf32>
    %c64_i32_47 = arith.constant 64 : i32
    %171 = tpu.dynamic_rotate %164 by %c64_i32_47 dim 1 : vector<2x128xf32>, i32 -> vector<2x128xf32>
    %172 = vector.broadcast %13 : vector<1x128xf32> to vector<2x128xf32>
    %173 = arith.addf %171, %172 : vector<2x128xf32>
    %174 = arith.mulf %170, %173 : vector<2x128xf32>
    %175 = arith.addf %163, %174 : vector<2x128xf32>
    %176 = math.tanh %175 : vector<2x128xf32>
    %c96_i32_48 = arith.constant 96 : i32
    %177 = tpu.dynamic_rotate %170 by %c96_i32_48 dim 1 : vector<2x128xf32>, i32 -> vector<2x128xf32>
    %cst_49 = arith.constant 1.000000e+00 : f32
    %178 = vector.broadcast %cst_49 : f32 to vector<2x128xf32>
    %179 = arith.subf %178, %177 : vector<2x128xf32>
    %180 = arith.mulf %179, %176 : vector<2x128xf32>
    %181 = arith.mulf %177, %161 : vector<2x128xf32>
    %182 = arith.addf %180, %181 : vector<2x128xf32>
    %183 = vector.extract_strided_slice %182 {offsets = [0, 0], sizes = [2, 32], strides = [1, 1]} : vector<2x128xf32> to vector<2x32xf32>
    %c0_50 = arith.constant 0 : index
    %c0_51 = arith.constant 0 : index
    %184 = vector.load %arg9[%c0_50, %c0_51] : memref<2x32xf32, #tpu.memory_space<vmem>>, vector<2x32xf32>
    tpu.vector_store %arg9[%c0_50, %c0_51], %183 {strides = array<i32>} : memref<2x32xf32, #tpu.memory_space<vmem>>, vector<2x32xf32>,
    %185 = tpu.concatenate %35, %56, %77, %98, %119, %140, %161, %182 in 0 : vector<2x128xf32>, vector<2x128xf32>, vector<2x128xf32>, vector<2x128xf32>, vector<2x128xf32>, vector<2x128xf32>, vector<2x128xf32>, vector<2x128xf32> -> vector<16x128xf32>
    %c0_52 = arith.constant 0 : index
    %c0_53 = arith.constant 0 : index
    %186 = vector.load %arg6[%c0_52, %c0_53] : memref<128x128xf32, #tpu.memory_space<vmem>>, vector<128x128xf32>
    %cst_54 = arith.constant dense<0.000000e+00> : vector<16x128xf32>
    %187 = tpu.matmul %185, %186, %cst_54 {dimension_numbers = #tpu.dot_dimension_numbers<[1], [0], [0], [1], [0, 0, 1, 1], [], []>} : vector<16x128xf32>, vector<128x128xf32>, vector<16x128xf32> -> vector<16x128xf32>
    %c0_55 = arith.constant 0 : index
    %c0_56 = arith.constant 0 : index
    %188 = vector.load %arg7[%c0_55, %c0_56] : memref<1x128xf32, #tpu.memory_space<vmem>>, vector<1x128xf32>
    %189 = vector.broadcast %188 : vector<1x128xf32> to vector<16x128xf32>
    %190 = arith.addf %187, %189 : vector<16x128xf32>
    %c0_57 = arith.constant 0 : index
    %c0_58 = arith.constant 0 : index
    %191 = vector.load %arg8[%c0_57, %c0_58] : memref<16x128xf32, #tpu.memory_space<vmem>>, vector<16x128xf32>
    tpu.vector_store %arg8[%c0_57, %c0_58], %190 {strides = array<i32>} : memref<16x128xf32, #tpu.memory_space<vmem>>, vector<16x128xf32>,
    return
  }
}

</mosaic_0001>

<llo_original>
// kernel: _gru_model_forward.1
$region0: #{_gru_model_forward.1}
  #allocation0 [shape = 'u32[]', space=smem, size = 0x4, offset = 0x4, fixed_abs, tag = 'smem constant byte address 0x4 - core index']
  #allocation1 [shape = 'u32[144,128]{1,0:T(1,128)}', space=vmem, size = 0x12000, scoped, tag = 'internal scratch']
  %s0 = inlined_call_operand.vmem [shape: s32[16,1], index: 0, kind: input, shape index: {}]
  %s1 = inlined_call_operand.vmem [shape: f32[48,128], index: 1, kind: input, shape index: {}]
  %s2 = inlined_call_operand.vmem [shape: f32[2,128], index: 2, kind: input, shape index: {}]
  %s3 = inlined_call_operand.hbm [shape: f32[128,128], index: 3, kind: input, shape index: {}]
  %s4 = inlined_call_operand.vmem [shape: f32[1,128], index: 4, kind: input, shape index: {}]
  %s5 = inlined_call_operand.vmem [shape: f32[1,128], index: 5, kind: input, shape index: {}]
  %s6 = inlined_call_operand.hbm [shape: f32[128,128], index: 6, kind: input, shape index: {}]
  %s7 = inlined_call_operand.vmem [shape: f32[1,128], index: 7, kind: input, shape index: {}]
  %s8 = inlined_call_operand.vmem [shape: f32[16,128], index: 8, kind: output, shape index: {0}]
  %s9 = inlined_call_operand.hbm [shape: f32[2,32], index: 9, kind: output, shape index: {1}]
  %10 = xla_tuple %s8, %s9
  %s11 = sld [smem:[#allocation0]]
  $region58: #{_gru_model_forward.1} parent=0
    _
  %s13 = ssub.s32 1, %s11
  %s14 = scalar_select 0, %s13, %s11
  $region1: #{_gru_model_forward.1} parent=0
    #allocation2 [shape = 'u8[65536]{0}', space=vmem, size = 0x10000, scoped, tag = 'input window, operand 3, single buffered']
    #allocation3 [shape = 's32[1]{0}', space=sflag, size = 0x4, scoped, tag = 'scoped memory for _gru_model_forward.1']
    #allocation4 [shape = 's32[1]{0}', space=sflag, size = 0x4, scoped, tag = 'scoped memory for _gru_model_forward.1']
    #allocation5 [shape = 'u8[65536]{0}', space=vmem, size = 0x10000, scoped, tag = 'input window, operand 6, single buffered']
    #allocation6 [shape = 's32[1]{0}', space=sflag, size = 0x4, scoped, tag = 'scoped memory for _gru_model_forward.1']
    #allocation7 [shape = 'u8[1024]{0}', space=vmem, size = 0x400, scoped, tag = 'output window, operand 1, single buffered']
    %15 = vsyncpa [#allocation3], 0
    %16 = vsyncpa [#allocation6], 0
    %17 = vsyncpa [#allocation4], 0
    // Predicated region
    $region2: #{_gru_model_forward.1} parent=1 // pred_check
      _
    $region3: #{_gru_model_forward.1} parent=1 // pred_check_branch
      %19 = sbr.rel (0) target = $region5
    $region4: #{_gru_model_forward.1} parent=1 // pred_region
      _
    $region5: #{_gru_model_forward.1} parent=1 // pred_fallthru
      _
    // Predicated region
    $region6: #{_gru_model_forward.1} parent=1 // pred_check
      _
    $region7: #{_gru_model_forward.1} parent=1 // pred_check_branch
      %21 = sbr.rel (0) target = $region9
    $region8: #{_gru_model_forward.1} parent=1 // pred_region
      _
    $region9: #{_gru_model_forward.1} parent=1 // pred_fallthru
      _
    // Predicated region
    $region10: #{_gru_model_forward.1} parent=1 // pred_check
      _
    $region11: #{_gru_model_forward.1} parent=1 // pred_check_branch
      %23 = sbr.rel (0) target = $region13
    $region12: #{_gru_model_forward.1} parent=1 // pred_region
      _
    $region13: #{_gru_model_forward.1} parent=1 // pred_fallthru
      _
    // Predicated region
    $region14: #{_gru_model_forward.1} parent=1 // pred_check
      _
    $region15: #{_gru_model_forward.1} parent=1 // pred_check_branch
      %25 = sbr.rel (0) target = $region17
    $region16: #{_gru_model_forward.1} parent=1 // pred_region
      %s27 = ssub.s32 2048, 2048
      %28 = vsyncadd [#allocation3], %s27
      %s29 = sshll.u32 [#allocation2], 4
      %s30 = int_to_ptr.vmem [resolvable:$true] %s29
      %35 = dma.hbm_to_vmem [thread:$0]  %s3, 2048, %s30, [#allocation3], 128, 128, 8
    $region17: #{_gru_model_forward.1} parent=1 // pred_fallthru
      _
    // Predicated region
    $region18: #{_gru_model_forward.1} parent=1 // pred_check
      _
    $region19: #{_gru_model_forward.1} parent=1 // pred_check_branch
      %37 = sbr.rel (0) target = $region21
    $region20: #{_gru_model_forward.1} parent=1 // pred_region
      _
    $region21: #{_gru_model_forward.1} parent=1 // pred_fallthru
      _
    // Predicated region
    $region22: #{_gru_model_forward.1} parent=1 // pred_check
      _
    $region23: #{_gru_model_forward.1} parent=1 // pred_check_branch
      %39 = sbr.rel (0) target = $region25
    $region24: #{_gru_model_forward.1} parent=1 // pred_region
      _
    $region25: #{_gru_model_forward.1} parent=1 // pred_fallthru
      _
    // Predicated region
    $region26: #{_gru_model_forward.1} parent=1 // pred_check
      _
    $region27: #{_gru_model_forward.1} parent=1 // pred_check_branch
      %41 = sbr.rel (0) target = $region29
    $region28: #{_gru_model_forward.1} parent=1 // pred_region
      %s43 = ssub.s32 2048, 2048
      %44 = vsyncadd [#allocation6], %s43
      %s45 = sshll.u32 [#allocation5], 4
      %s46 = int_to_ptr.vmem [resolvable:$true] %s45
      %51 = dma.hbm_to_vmem [thread:$0]  %s6, 2048, %s46, [#allocation6], 128, 128, 8
    $region29: #{_gru_model_forward.1} parent=1 // pred_fallthru
      _
    // Predicated region
    $region30: #{_gru_model_forward.1} parent=1 // pred_check
      _
    $region31: #{_gru_model_forward.1} parent=1 // pred_check_branch
      %53 = sbr.rel (0) target = $region33
    $region32: #{_gru_model_forward.1} parent=1 // pred_region
      _
    $region33: #{_gru_model_forward.1} parent=1 // pred_fallthru
      _
    // Predicated region
    $region34: #{_gru_model_forward.1} parent=1 // pred_check
      _
    $region35: #{_gru_model_forward.1} parent=1 // pred_check_branch
      %55 = sbr.rel (0) target = $region37
    $region36: #{_gru_model_forward.1} parent=1 // pred_region
      %56 = dma.done [#allocation3], 2048
    $region37: #{_gru_model_forward.1} parent=1 // pred_fallthru
      _
    // Predicated region
    $region38: #{_gru_model_forward.1} parent=1 // pred_check
      _
    $region39: #{_gru_model_forward.1} parent=1 // pred_check_branch
      %58 = sbr.rel (0) target = $region41
    $region40: #{_gru_model_forward.1} parent=1 // pred_region
      %59 = dma.done [#allocation6], 2048
    $region41: #{_gru_model_forward.1} parent=1 // pred_fallthru
      _
    %v60 = vld [vmem:[%s0] sm:$0xff]
    %v61 = vld [vmem:[%s0 + $0x8] sm:$0xff]
    %v62 = vlaneseq
    %v63 = vand.u32 %v62, 127
    %64 = vset.pattern.permute.xlu0 0
    %65 = vperm.xlu0 %64, %v60
    %v66 = vpop.permute.xlu0 %65
    %67 = vset.pattern.permute.xlu0 0
    %68 = vperm.xlu0 %67, %v61
    %v69 = vpop.permute.xlu0 %68
    %vm70 = vcmp.eq.s32.totalorder %v66, %v63
    %vm71 = vcmp.eq.s32.totalorder %v69, %v63
    %v72 = vsel %vm70, 1, 0
    %v73 = vsel %vm71, 1, 0
    %v74 = vcvt.s32.f32 %v72
    %v75 = vcvt.s32.f32 %v73
    %v76 = vld [vmem:[%s1] sm:$0xff]
    %v77 = vld [vmem:[%s1 + $0x8] sm:$0xff]
    %v78 = vld [vmem:[%s1 + $0x10] sm:$0xff]
    %v79 = vld [vmem:[%s1 + $0x18] sm:$0xff]
    %v80 = vld [vmem:[%s1 + $0x20] sm:$0xff]
    %v81 = vld [vmem:[%s1 + $0x28] sm:$0xff]
    %v82 = vld [vmem:[%s4] sm:$0x1]
    %v84 = vlaneseq
    %v85 = vshrl.u32 %v84, 7
    %v86 = vsub.s32 0, %v85
    %v87 = vrot.slane %v82, %v86
    %vm89 = vcmask 392192
    %v91 = vsel %vm89, %v74, 0
    %v94 = vsel %vm89, %v75, 0
    %96 = vmatprep.subr.mxu0 0.0
    %97 = vmatpush1.msra.mxu0 %v76
    %98 = vmatprep.subr.mxu0 0.0
    %99 = vmatpush1.msra.mxu0 %v77
    %100 = vmatprep.subr.mxu0 0.0
    %101 = vmatpush1.msra.mxu0 %v78
    %102 = vmatprep.subr.mxu0 0.0
    %103 = vmatpush1.msra.mxu0 %v79
    %104 = vmatprep.subr.mxu0 0.0
    %105 = vmatpush1.msra.mxu0 %v80
    %106 = vmatprep.subr.mxu0 0.0
    %107 = vmatpush1.msra.mxu0 %v81
    %108 = vmatprep.subr.mxu0 0.0
    %109 = vmatpush1.msra.mxu0 0.0
    %110 = vmatprep.subr.mxu0 0.0
    %111 = vmatpush1.msra.mxu0 0.0
    %112 = vmatprep.subr.mxu0 0.0
    %113 = vmatpush1.msra.mxu0 0.0
    %114 = vmatprep.subr.mxu0 0.0
    %115 = vmatpush1.msra.mxu0 0.0
    %116 = vmatprep.subr.mxu0 0.0
    %117 = vmatpush1.msra.mxu0 0.0
    %118 = vmatprep.subr.mxu0 0.0
    %119 = vmatpush1.msra.mxu0 0.0
    %120 = vmatprep.subr.mxu0 0.0
    %121 = vmatpush1.msra.mxu0 0.0
    %122 = vmatprep.subr.mxu0 0.0
    %123 = vmatpush1.msra.mxu0 0.0
    %124 = vmatprep.subr.mxu0 0.0
    %125 = vmatpush1.msra.mxu0 0.0
    %126 = vmatprep.subr.mxu0 0.0
    %127 = vmatpush1.msra.mxu0 0.0
    %128 = vmatprep.subr.mxu0 0.0
    %129 = vmatpush1.msra.mxu0 0.0
    %130 = vmatprep.subr.mxu0 0.0
    %131 = vmatpush1.msra.mxu0 0.0
    %132 = vmatprep.subr.mxu0 0.0
    %133 = vmatpush1.msra.mxu0 0.0
    %134 = vmatprep.subr.mxu0 0.0
    %135 = vmatpush1.msra.mxu0 0.0
    %136 = vmatprep.subr.mxu0 0.0
    %137 = vmatpush1.msra.mxu0 0.0
    %138 = vmatprep.subr.mxu0 0.0
    %139 = vmatpush1.msra.mxu0 0.0
    %140 = vmatprep.subr.mxu0 0.0
    %141 = vmatpush1.msra.mxu0 0.0
    %142 = vmatprep.subr.mxu0 0.0
    %143 = vmatpush1.msra.mxu0 0.0
    %144 = vmatprep.subr.mxu0 0.0
    %145 = vmatpush1.msra.mxu0 0.0
    %146 = vmatprep.subr.mxu0 0.0
    %147 = vmatpush1.msra.mxu0 0.0
    %148 = vmatprep.subr.mxu0 0.0
    %149 = vmatpush1.msra.mxu0 0.0
    %150 = vmatprep.subr.mxu0 0.0
    %151 = vmatpush1.msra.mxu0 0.0
    %152 = vmatprep.subr.mxu0 0.0
    %153 = vmatpush1.msra.mxu0 0.0
    %154 = vmatprep.subr.mxu0 0.0
    %155 = vmatpush1.msra.mxu0 0.0
    %156 = vmatprep.subr.mxu0 0.0
    %157 = vmatpush1.msra.mxu0 0.0
    %158 = vmatprep.subr.mxu0 0.0
    %159 = vmatpush1.msra.mxu0 0.0
    %160 = vmatprep.mubr.f32.mxu0 0.0
    %161 = vmatmul.mubr.f32.gmra.mrb[0].mxu0 %v91
    %v162 = vpop.f32.mrb[0].mxu0
    %v163 = vadd.f32 %v87, %v162
    %v164 = vpop.f32.mrb[0].mxu0
    %165 = vmatprep.mubr.f32.mxu0 0.0
    %166 = vmatmul.mubr.f32.gmra.mrb[0].mxu0 %v94
    %v167 = vpop.f32.mrb[0].mxu0
    %v168 = vadd.f32 %v87, %v167
    %v169 = vpop.f32.mrb[0].mxu0
    %170 = vdwg.mxu0
    %171 = vrot.lane.b32.xlu0 %v163, 64
    %v172 = vpop.permute.xlu0 %171
    %173 = vrot.lane.b32.xlu0 %v168, 64
    %v174 = vpop.permute.xlu0 %173
    %v175 = vld [vmem:[#allocation2] sm:$0xff]
    %v176 = vld [vmem:[#allocation2 + $0x8] sm:$0xff]
    %v177 = vld [vmem:[#allocation2 + $0x10] sm:$0xff]
    %v178 = vld [vmem:[#allocation2 + $0x18] sm:$0xff]
    %v179 = vld [vmem:[#allocation2 + $0x20] sm:$0xff]
    %v180 = vld [vmem:[#allocation2 + $0x28] sm:$0xff]
    %v181 = vld [vmem:[#allocation2 + $0x30] sm:$0xff]
    %v182 = vld [vmem:[#allocation2 + $0x38] sm:$0xff]
    %v183 = vld [vmem:[#allocation2 + $0x40] sm:$0xff]
    %v184 = vld [vmem:[#allocation2 + $0x48] sm:$0xff]
    %v185 = vld [vmem:[#allocation2 + $0x50] sm:$0xff]
    %v186 = vld [vmem:[#allocation2 + $0x58] sm:$0xff]
    %v187 = vld [vmem:[#allocation2 + $0x60] sm:$0xff]
    %v188 = vld [vmem:[#allocation2 + $0x68] sm:$0xff]
    %v189 = vld [vmem:[#allocation2 + $0x70] sm:$0xff]
    %v190 = vld [vmem:[#allocation2 + $0x78] sm:$0xff]
    %v191 = vld [vmem:[%s5] sm:$0x1]
    %v192 = vld [vmem:[%s2] sm:$0x3]
    %193 = vmatprep.subr.mxu0 0.0
    %194 = vmatpush1.msra.mxu0 %v175
    %195 = vmatprep.subr.mxu0 0.0
    %196 = vmatpush1.msra.mxu0 %v176
    %197 = vmatprep.subr.mxu0 0.0
    %198 = vmatpush1.msra.mxu0 %v177
    %199 = vmatprep.subr.mxu0 0.0
    %200 = vmatpush1.msra.mxu0 %v178
    %201 = vmatprep.subr.mxu0 0.0
    %202 = vmatpush1.msra.mxu0 %v179
    %203 = vmatprep.subr.mxu0 0.0
    %204 = vmatpush1.msra.mxu0 %v180
    %205 = vmatprep.subr.mxu0 0.0
    %206 = vmatpush1.msra.mxu0 %v181
    %207 = vmatprep.subr.mxu0 0.0
    %208 = vmatpush1.msra.mxu0 %v182
    %209 = vmatprep.subr.mxu0 0.0
    %210 = vmatpush1.msra.mxu0 %v183
    %211 = vmatprep.subr.mxu0 0.0
    %212 = vmatpush1.msra.mxu0 %v184
    %213 = vmatprep.subr.mxu0 0.0
    %214 = vmatpush1.msra.mxu0 %v185
    %215 = vmatprep.subr.mxu0 0.0
    %216 = vmatpush1.msra.mxu0 %v186
    %217 = vmatprep.subr.mxu0 0.0
    %218 = vmatpush1.msra.mxu0 %v187
    %219 = vmatprep.subr.mxu0 0.0
    %220 = vmatpush1.msra.mxu0 %v188
    %221 = vmatprep.subr.mxu0 0.0
    %222 = vmatpush1.msra.mxu0 %v189
    %223 = vmatprep.subr.mxu0 0.0
    %224 = vmatpush1.msra.mxu0 %v190
    %225 = vmatprep.subr.mxu0 0.0
    %226 = vmatpush1.msra.mxu0 0.0
    %227 = vmatprep.subr.mxu0 0.0
    %228 = vmatpush1.msra.mxu0 0.0
    %229 = vmatprep.subr.mxu0 0.0
    %230 = vmatpush1.msra.mxu0 0.0
    %231 = vmatprep.subr.mxu0 0.0
    %232 = vmatpush1.msra.mxu0 0.0
    %233 = vmatprep.subr.mxu0 0.0
    %234 = vmatpush1.msra.mxu0 0.0
    %235 = vmatprep.subr.mxu0 0.0
    %236 = vmatpush1.msra.mxu0 0.0
    %237 = vmatprep.subr.mxu0 0.0
    %238 = vmatpush1.msra.mxu0 0.0
    %239 = vmatprep.subr.mxu0 0.0
    %240 = vmatpush1.msra.mxu0 0.0
    %241 = vmatprep.subr.mxu0 0.0
    %242 = vmatpush1.msra.mxu0 0.0
    %243 = vmatprep.subr.mxu0 0.0
    %244 = vmatpush1.msra.mxu0 0.0
    %245 = vmatprep.subr.mxu0 0.0
    %246 = vmatpush1.msra.mxu0 0.0
    %247 = vmatprep.subr.mxu0 0.0
    %248 = vmatpush1.msra.mxu0 0.0
    %249 = vmatprep.subr.mxu0 0.0
    %250 = vmatpush1.msra.mxu0 0.0
    %251 = vmatprep.subr.mxu0 0.0
    %252 = vmatpush1.msra.mxu0 0.0
    %253 = vmatprep.subr.mxu0 0.0
    %254 = vmatpush1.msra.mxu0 0.0
    %255 = vmatprep.subr.mxu0 0.0
    %256 = vmatpush1.msra.mxu0 0.0
    %257 = vmatprep.mubr.f32.mxu0 0.0
    %258 = vmatmul.mubr.f32.gmra.mrb[0].mxu0 %v192
    %v259 = vpop.f32.mrb[0].mxu0
    %v260 = vadd.f32 0.0, %v259
    %v261 = vpop.f32.mrb[0].mxu0
    %262 = vdwg.mxu0
    %v263 = vadd.f32 %v163, %v260
    %v264 = vxor.u32 %v263, 2147483648
    %v265 = vmul.f32 %v264, 1.442695
    %v266 = vpow.pop %v265
    %v267 = vadd.f32 %v266, 1.0
    %v268 = vrcp.pop %v267
    %v269 = vmul.f32 1.0, %v268
    %270 = vrot.lane.b32.xlu0 %v260, 64
    %v271 = vpop.permute.xlu0 %270
    %v273 = vlaneseq
    %v274 = vshrl.u32 %v273, 7
    %v275 = vsub.s32 0, %v274
    %v276 = vrot.slane %v191, %v275
    %v278 = vadd.f32 %v271, %v276
    %v279 = vmul.f32 %v269, %v278
    %v280 = vadd.f32 %v172, %v279
    %v281 = vtanh.pop %v280
    %282 = vrot.lane.b32.xlu0 %v269, 96
    %v283 = vpop.permute.xlu0 %282
    %v284 = vsub.f32 1.0, %v283
    %v285 = vmul.f32 %v284, %v281
    %v286 = vmul.f32 %v283, %v192
    %v287 = vadd.f32 %v285, %v286
    %288 = vmatprep.subr.mxu0 0.0
    %289 = vmatpush1.msra.mxu0 %v175
    %290 = vmatprep.subr.mxu0 0.0
    %291 = vmatpush1.msra.mxu0 %v176
    %292 = vmatprep.subr.mxu0 0.0
    %293 = vmatpush1.msra.mxu0 %v177
    %294 = vmatprep.subr.mxu0 0.0
    %295 = vmatpush1.msra.mxu0 %v178
    %296 = vmatprep.subr.mxu0 0.0
    %297 = vmatpush1.msra.mxu0 %v179
    %298 = vmatprep.subr.mxu0 0.0
    %299 = vmatpush1.msra.mxu0 %v180
    %300 = vmatprep.subr.mxu0 0.0
    %301 = vmatpush1.msra.mxu0 %v181
    %302 = vmatprep.subr.mxu0 0.0
    %303 = vmatpush1.msra.mxu0 %v182
    %304 = vmatprep.subr.mxu0 0.0
    %305 = vmatpush1.msra.mxu0 %v183
    %306 = vmatprep.subr.mxu0 0.0
    %307 = vmatpush1.msra.mxu0 %v184
    %308 = vmatprep.subr.mxu0 0.0
    %309 = vmatpush1.msra.mxu0 %v185
    %310 = vmatprep.subr.mxu0 0.0
    %311 = vmatpush1.msra.mxu0 %v186
    %312 = vmatprep.subr.mxu0 0.0
    %313 = vmatpush1.msra.mxu0 %v187
    %314 = vmatprep.subr.mxu0 0.0
    %315 = vmatpush1.msra.mxu0 %v188
    %316 = vmatprep.subr.mxu0 0.0
    %317 = vmatpush1.msra.mxu0 %v189
    %318 = vmatprep.subr.mxu0 0.0
    %319 = vmatpush1.msra.mxu0 %v190
    %320 = vmatprep.subr.mxu0 0.0
    %321 = vmatpush1.msra.mxu0 0.0
    %322 = vmatprep.subr.mxu0 0.0
    %323 = vmatpush1.msra.mxu0 0.0
    %324 = vmatprep.subr.mxu0 0.0
    %325 = vmatpush1.msra.mxu0 0.0
    %326 = vmatprep.subr.mxu0 0.0
    %327 = vmatpush1.msra.mxu0 0.0
    %328 = vmatprep.subr.mxu0 0.0
    %329 = vmatpush1.msra.mxu0 0.0
    %330 = vmatprep.subr.mxu0 0.0
    %331 = vmatpush1.msra.mxu0 0.0
    %332 = vmatprep.subr.mxu0 0.0
    %333 = vmatpush1.msra.mxu0 0.0
    %334 = vmatprep.subr.mxu0 0.0
    %335 = vmatpush1.msra.mxu0 0.0
    %336 = vmatprep.subr.mxu0 0.0
    %337 = vmatpush1.msra.mxu0 0.0
    %338 = vmatprep.subr.mxu0 0.0
    %339 = vmatpush1.msra.mxu0 0.0
    %340 = vmatprep.subr.mxu0 0.0
    %341 = vmatpush1.msra.mxu0 0.0
    %342 = vmatprep.subr.mxu0 0.0
    %343 = vmatpush1.msra.mxu0 0.0
    %344 = vmatprep.subr.mxu0 0.0
    %345 = vmatpush1.msra.mxu0 0.0
    %346 = vmatprep.subr.mxu0 0.0
    %347 = vmatpush1.msra.mxu0 0.0
    %348 = vmatprep.subr.mxu0 0.0
    %349 = vmatpush1.msra.mxu0 0.0
    %350 = vmatprep.subr.mxu0 0.0
    %351 = vmatpush1.msra.mxu0 0.0
    %352 = vmatprep.mubr.f32.mxu0 0.0
    %353 = vmatmul.mubr.f32.gmra.mrb[0].mxu0 %v287
    %v354 = vpop.f32.mrb[0].mxu0
    %v355 = vadd.f32 0.0, %v354
    %v356 = vpop.f32.mrb[0].mxu0
    %357 = vdwg.mxu0
    %v359 = vrot.slane %v355, 6
    %v361 = vadd.f32 %v163, %v359
    %v362 = vxor.u32 %v361, 2147483648
    %v363 = vmul.f32 %v362, 1.442695
    %v364 = vpow.pop %v363
    %v365 = vadd.f32 %v364, 1.0
    %v366 = vrcp.pop %v365
    %v367 = vmul.f32 1.0, %v366
    %368 = vrot.lane.b32.xlu0 %v355, 64
    %v369 = vpop.permute.xlu0 %368
    %v370 = vadd.f32 %v369, %v276
    %v372 = vrot.slane %v370, 6
    %v374 = vmul.f32 %v367, %v372
    %v375 = vadd.f32 %v172, %v374
    %v376 = vtanh.pop %v375
    %v378 = vrot.slane %v367, 2
    %380 = vrot.lane.b32.xlu0 %v378, 96
    %v381 = vpop.permute.xlu0 %380
    %v382 = vsub.f32 1.0, %v381
    %v384 = vrot.slane %v376, 2
    %v386 = vmul.f32 %v382, %v384
    %v387 = vmul.f32 %v381, %v287
    %v388 = vadd.f32 %v386, %v387
    %389 = vmatprep.subr.mxu0 0.0
    %390 = vmatpush1.msra.mxu0 %v175
    %391 = vmatprep.subr.mxu0 0.0
    %392 = vmatpush1.msra.mxu0 %v176
    %393 = vmatprep.subr.mxu0 0.0
    %394 = vmatpush1.msra.mxu0 %v177
    %395 = vmatprep.subr.mxu0 0.0
    %396 = vmatpush1.msra.mxu0 %v178
    %397 = vmatprep.subr.mxu0 0.0
    %398 = vmatpush1.msra.mxu0 %v179
    %399 = vmatprep.subr.mxu0 0.0
    %400 = vmatpush1.msra.mxu0 %v180
    %401 = vmatprep.subr.mxu0 0.0
    %402 = vmatpush1.msra.mxu0 %v181
    %403 = vmatprep.subr.mxu0 0.0
    %404 = vmatpush1.msra.mxu0 %v182
    %405 = vmatprep.subr.mxu0 0.0
    %406 = vmatpush1.msra.mxu0 %v183
    %407 = vmatprep.subr.mxu0 0.0
    %408 = vmatpush1.msra.mxu0 %v184
    %409 = vmatprep.subr.mxu0 0.0
    %410 = vmatpush1.msra.mxu0 %v185
    %411 = vmatprep.subr.mxu0 0.0
    %412 = vmatpush1.msra.mxu0 %v186
    %413 = vmatprep.subr.mxu0 0.0
    %414 = vmatpush1.msra.mxu0 %v187
    %415 = vmatprep.subr.mxu0 0.0
    %416 = vmatpush1.msra.mxu0 %v188
    %417 = vmatprep.subr.mxu0 0.0
    %418 = vmatpush1.msra.mxu0 %v189
    %419 = vmatprep.subr.mxu0 0.0
    %420 = vmatpush1.msra.mxu0 %v190
    %421 = vmatprep.subr.mxu0 0.0
    %422 = vmatpush1.msra.mxu0 0.0
    %423 = vmatprep.subr.mxu0 0.0
    %424 = vmatpush1.msra.mxu0 0.0
    %425 = vmatprep.subr.mxu0 0.0
    %426 = vmatpush1.msra.mxu0 0.0
    %427 = vmatprep.subr.mxu0 0.0
    %428 = vmatpush1.msra.mxu0 0.0
    %429 = vmatprep.subr.mxu0 0.0
    %430 = vmatpush1.msra.mxu0 0.0
    %431 = vmatprep.subr.mxu0 0.0
    %432 = vmatpush1.msra.mxu0 0.0
    %433 = vmatprep.subr.mxu0 0.0
    %434 = vmatpush1.msra.mxu0 0.0
    %435 = vmatprep.subr.mxu0 0.0
    %436 = vmatpush1.msra.mxu0 0.0
    %437 = vmatprep.subr.mxu0 0.0
    %438 = vmatpush1.msra.mxu0 0.0
    %439 = vmatprep.subr.mxu0 0.0
    %440 = vmatpush1.msra.mxu0 0.0
    %441 = vmatprep.subr.mxu0 0.0
    %442 = vmatpush1.msra.mxu0 0.0
    %443 = vmatprep.subr.mxu0 0.0
    %444 = vmatpush1.msra.mxu0 0.0
    %445 = vmatprep.subr.mxu0 0.0
    %446 = vmatpush1.msra.mxu0 0.0
    %447 = vmatprep.subr.mxu0 0.0
    %448 = vmatpush1.msra.mxu0 0.0
    %449 = vmatprep.subr.mxu0 0.0
    %450 = vmatpush1.msra.mxu0 0.0
    %451 = vmatprep.subr.mxu0 0.0
    %452 = vmatpush1.msra.mxu0 0.0
    %453 = vmatprep.mubr.f32.mxu0 0.0
    %454 = vmatmul.mubr.f32.gmra.mrb[0].mxu0 %v388
    %v455 = vpop.f32.mrb[0].mxu0
    %v456 = vadd.f32 0.0, %v455
    %v457 = vpop.f32.mrb[0].mxu0
    %458 = vdwg.mxu0
    %v460 = vrot.slane %v456, 4
    %v462 = vadd.f32 %v163, %v460
    %v463 = vxor.u32 %v462, 2147483648
    %v464 = vmul.f32 %v463, 1.442695
    %v465 = vpow.pop %v464
    %v466 = vadd.f32 %v465, 1.0
    %v467 = vrcp.pop %v466
    %v468 = vmul.f32 1.0, %v467
    %469 = vrot.lane.b32.xlu0 %v456, 64
    %v470 = vpop.permute.xlu0 %469
    %v471 = vadd.f32 %v470, %v276
    %v473 = vrot.slane %v471, 4
    %v475 = vmul.f32 %v468, %v473
    %v476 = vadd.f32 %v172, %v475
    %v477 = vtanh.pop %v476
    %v479 = vrot.slane %v468, 4
    %481 = vrot.lane.b32.xlu0 %v479, 96
    %v482 = vpop.permute.xlu0 %481
    %v483 = vsub.f32 1.0, %v482
    %v485 = vrot.slane %v477, 4
    %v487 = vmul.f32 %v483, %v485
    %v488 = vmul.f32 %v482, %v388
    %v489 = vadd.f32 %v487, %v488
    %490 = vmatprep.subr.mxu0 0.0
    %491 = vmatpush1.msra.mxu0 %v175
    %492 = vmatprep.subr.mxu0 0.0
    %493 = vmatpush1.msra.mxu0 %v176
    %494 = vmatprep.subr.mxu0 0.0
    %495 = vmatpush1.msra.mxu0 %v177
    %496 = vmatprep.subr.mxu0 0.0
    %497 = vmatpush1.msra.mxu0 %v178
    %498 = vmatprep.subr.mxu0 0.0
    %499 = vmatpush1.msra.mxu0 %v179
    %500 = vmatprep.subr.mxu0 0.0
    %501 = vmatpush1.msra.mxu0 %v180
    %502 = vmatprep.subr.mxu0 0.0
    %503 = vmatpush1.msra.mxu0 %v181
    %504 = vmatprep.subr.mxu0 0.0
    %505 = vmatpush1.msra.mxu0 %v182
    %506 = vmatprep.subr.mxu0 0.0
    %507 = vmatpush1.msra.mxu0 %v183
    %508 = vmatprep.subr.mxu0 0.0
    %509 = vmatpush1.msra.mxu0 %v184
    %510 = vmatprep.subr.mxu0 0.0
    %511 = vmatpush1.msra.mxu0 %v185
    %512 = vmatprep.subr.mxu0 0.0
    %513 = vmatpush1.msra.mxu0 %v186
    %514 = vmatprep.subr.mxu0 0.0
    %515 = vmatpush1.msra.mxu0 %v187
    %516 = vmatprep.subr.mxu0 0.0
    %517 = vmatpush1.msra.mxu0 %v188
    %518 = vmatprep.subr.mxu0 0.0
    %519 = vmatpush1.msra.mxu0 %v189
    %520 = vmatprep.subr.mxu0 0.0
    %521 = vmatpush1.msra.mxu0 %v190
    %522 = vmatprep.subr.mxu0 0.0
    %523 = vmatpush1.msra.mxu0 0.0
    %524 = vmatprep.subr.mxu0 0.0
    %525 = vmatpush1.msra.mxu0 0.0
    %526 = vmatprep.subr.mxu0 0.0
    %527 = vmatpush1.msra.mxu0 0.0
    %528 = vmatprep.subr.mxu0 0.0
    %529 = vmatpush1.msra.mxu0 0.0
    %530 = vmatprep.subr.mxu0 0.0
    %531 = vmatpush1.msra.mxu0 0.0
    %532 = vmatprep.subr.mxu0 0.0
    %533 = vmatpush1.msra.mxu0 0.0
    %534 = vmatprep.subr.mxu0 0.0
    %535 = vmatpush1.msra.mxu0 0.0
    %536 = vmatprep.subr.mxu0 0.0
    %537 = vmatpush1.msra.mxu0 0.0
    %538 = vmatprep.subr.mxu0 0.0
    %539 = vmatpush1.msra.mxu0 0.0
    %540 = vmatprep.subr.mxu0 0.0
    %541 = vmatpush1.msra.mxu0 0.0
    %542 = vmatprep.subr.mxu0 0.0
    %543 = vmatpush1.msra.mxu0 0.0
    %544 = vmatprep.subr.mxu0 0.0
    %545 = vmatpush1.msra.mxu0 0.0
    %546 = vmatprep.subr.mxu0 0.0
    %547 = vmatpush1.msra.mxu0 0.0
    %548 = vmatprep.subr.mxu0 0.0
    %549 = vmatpush1.msra.mxu0 0.0
    %550 = vmatprep.subr.mxu0 0.0
    %551 = vmatpush1.msra.mxu0 0.0
    %552 = vmatprep.subr.mxu0 0.0
    %553 = vmatpush1.msra.mxu0 0.0
    %554 = vmatprep.mubr.f32.mxu0 0.0
    %555 = vmatmul.mubr.f32.gmra.mrb[0].mxu0 %v489
    %v556 = vpop.f32.mrb[0].mxu0
    %v557 = vadd.f32 0.0, %v556
    %v558 = vpop.f32.mrb[0].mxu0
    %559 = vdwg.mxu0
    %v561 = vrot.slane %v557, 2
    %v563 = vadd.f32 %v163, %v561
    %v564 = vxor.u32 %v563, 2147483648
    %v565 = vmul.f32 %v564, 1.442695
    %v566 = vpow.pop %v565
    %v567 = vadd.f32 %v566, 1.0
    %v568 = vrcp.pop %v567
    %v569 = vmul.f32 1.0, %v568
    %570 = vrot.lane.b32.xlu0 %v557, 64
    %v571 = vpop.permute.xlu0 %570
    %v572 = vadd.f32 %v571, %v276
    %v574 = vrot.slane %v572, 2
    %v576 = vmul.f32 %v569, %v574
    %v577 = vadd.f32 %v172, %v576
    %v578 = vtanh.pop %v577
    %v580 = vrot.slane %v569, 6
    %582 = vrot.lane.b32.xlu0 %v580, 96
    %v583 = vpop.permute.xlu0 %582
    %v584 = vsub.f32 1.0, %v583
    %v586 = vrot.slane %v578, 6
    %v588 = vmul.f32 %v584, %v586
    %v589 = vmul.f32 %v583, %v489
    %v590 = vadd.f32 %v588, %v589
    %591 = vmatprep.subr.mxu0 0.0
    %592 = vmatpush1.msra.mxu0 %v175
    %593 = vmatprep.subr.mxu0 0.0
    %594 = vmatpush1.msra.mxu0 %v176
    %595 = vmatprep.subr.mxu0 0.0
    %596 = vmatpush1.msra.mxu0 %v177
    %597 = vmatprep.subr.mxu0 0.0
    %598 = vmatpush1.msra.mxu0 %v178
    %599 = vmatprep.subr.mxu0 0.0
    %600 = vmatpush1.msra.mxu0 %v179
    %601 = vmatprep.subr.mxu0 0.0
    %602 = vmatpush1.msra.mxu0 %v180
    %603 = vmatprep.subr.mxu0 0.0
    %604 = vmatpush1.msra.mxu0 %v181
    %605 = vmatprep.subr.mxu0 0.0
    %606 = vmatpush1.msra.mxu0 %v182
    %607 = vmatprep.subr.mxu0 0.0
    %608 = vmatpush1.msra.mxu0 %v183
    %609 = vmatprep.subr.mxu0 0.0
    %610 = vmatpush1.msra.mxu0 %v184
    %611 = vmatprep.subr.mxu0 0.0
    %612 = vmatpush1.msra.mxu0 %v185
    %613 = vmatprep.subr.mxu0 0.0
    %614 = vmatpush1.msra.mxu0 %v186
    %615 = vmatprep.subr.mxu0 0.0
    %616 = vmatpush1.msra.mxu0 %v187
    %617 = vmatprep.subr.mxu0 0.0
    %618 = vmatpush1.msra.mxu0 %v188
    %619 = vmatprep.subr.mxu0 0.0
    %620 = vmatpush1.msra.mxu0 %v189
    %621 = vmatprep.subr.mxu0 0.0
    %622 = vmatpush1.msra.mxu0 %v190
    %623 = vmatprep.subr.mxu0 0.0
    %624 = vmatpush1.msra.mxu0 0.0
    %625 = vmatprep.subr.mxu0 0.0
    %626 = vmatpush1.msra.mxu0 0.0
    %627 = vmatprep.subr.mxu0 0.0
    %628 = vmatpush1.msra.mxu0 0.0
    %629 = vmatprep.subr.mxu0 0.0
    %630 = vmatpush1.msra.mxu0 0.0
    %631 = vmatprep.subr.mxu0 0.0
    %632 = vmatpush1.msra.mxu0 0.0
    %633 = vmatprep.subr.mxu0 0.0
    %634 = vmatpush1.msra.mxu0 0.0
    %635 = vmatprep.subr.mxu0 0.0
    %636 = vmatpush1.msra.mxu0 0.0
    %637 = vmatprep.subr.mxu0 0.0
    %638 = vmatpush1.msra.mxu0 0.0
    %639 = vmatprep.subr.mxu0 0.0
    %640 = vmatpush1.msra.mxu0 0.0
    %641 = vmatprep.subr.mxu0 0.0
    %642 = vmatpush1.msra.mxu0 0.0
    %643 = vmatprep.subr.mxu0 0.0
    %644 = vmatpush1.msra.mxu0 0.0
    %645 = vmatprep.subr.mxu0 0.0
    %646 = vmatpush1.msra.mxu0 0.0
    %647 = vmatprep.subr.mxu0 0.0
    %648 = vmatpush1.msra.mxu0 0.0
    %649 = vmatprep.subr.mxu0 0.0
    %650 = vmatpush1.msra.mxu0 0.0
    %651 = vmatprep.subr.mxu0 0.0
    %652 = vmatpush1.msra.mxu0 0.0
    %653 = vmatprep.subr.mxu0 0.0
    %654 = vmatpush1.msra.mxu0 0.0
    %655 = vmatprep.mubr.f32.mxu0 0.0
    %656 = vmatmul.mubr.f32.gmra.mrb[0].mxu0 %v590
    %v657 = vpop.f32.mrb[0].mxu0
    %v658 = vadd.f32 0.0, %v657
    %v659 = vpop.f32.mrb[0].mxu0
    %660 = vdwg.mxu0
    %v661 = vadd.f32 %v168, %v658
    %v662 = vxor.u32 %v661, 2147483648
    %v663 = vmul.f32 %v662, 1.442695
    %v664 = vpow.pop %v663
    %v665 = vadd.f32 %v664, 1.0
    %v666 = vrcp.pop %v665
    %v667 = vmul.f32 1.0, %v666
    %668 = vrot.lane.b32.xlu0 %v658, 64
    %v669 = vpop.permute.xlu0 %668
    %v670 = vadd.f32 %v669, %v276
    %v671 = vmul.f32 %v667, %v670
    %v672 = vadd.f32 %v174, %v671
    %v673 = vtanh.pop %v672
    %674 = vrot.lane.b32.xlu0 %v667, 96
    %v675 = vpop.permute.xlu0 %674
    %v676 = vsub.f32 1.0, %v675
    %v677 = vmul.f32 %v676, %v673
    %v678 = vmul.f32 %v675, %v590
    %v679 = vadd.f32 %v677, %v678
    %680 = vmatprep.subr.mxu0 0.0
    %681 = vmatpush1.msra.mxu0 %v175
    %682 = vmatprep.subr.mxu0 0.0
    %683 = vmatpush1.msra.mxu0 %v176
    %684 = vmatprep.subr.mxu0 0.0
    %685 = vmatpush1.msra.mxu0 %v177
    %686 = vmatprep.subr.mxu0 0.0
    %687 = vmatpush1.msra.mxu0 %v178
    %688 = vmatprep.subr.mxu0 0.0
    %689 = vmatpush1.msra.mxu0 %v179
    %690 = vmatprep.subr.mxu0 0.0
    %691 = vmatpush1.msra.mxu0 %v180
    %692 = vmatprep.subr.mxu0 0.0
    %693 = vmatpush1.msra.mxu0 %v181
    %694 = vmatprep.subr.mxu0 0.0
    %695 = vmatpush1.msra.mxu0 %v182
    %696 = vmatprep.subr.mxu0 0.0
    %697 = vmatpush1.msra.mxu0 %v183
    %698 = vmatprep.subr.mxu0 0.0
    %699 = vmatpush1.msra.mxu0 %v184
    %700 = vmatprep.subr.mxu0 0.0
    %701 = vmatpush1.msra.mxu0 %v185
    %702 = vmatprep.subr.mxu0 0.0
    %703 = vmatpush1.msra.mxu0 %v186
    %704 = vmatprep.subr.mxu0 0.0
    %705 = vmatpush1.msra.mxu0 %v187
    %706 = vmatprep.subr.mxu0 0.0
    %707 = vmatpush1.msra.mxu0 %v188
    %708 = vmatprep.subr.mxu0 0.0
    %709 = vmatpush1.msra.mxu0 %v189
    %710 = vmatprep.subr.mxu0 0.0
    %711 = vmatpush1.msra.mxu0 %v190
    %712 = vmatprep.subr.mxu0 0.0
    %713 = vmatpush1.msra.mxu0 0.0
    %714 = vmatprep.subr.mxu0 0.0
    %715 = vmatpush1.msra.mxu0 0.0
    %716 = vmatprep.subr.mxu0 0.0
    %717 = vmatpush1.msra.mxu0 0.0
    %718 = vmatprep.subr.mxu0 0.0
    %719 = vmatpush1.msra.mxu0 0.0
    %720 = vmatprep.subr.mxu0 0.0
    %721 = vmatpush1.msra.mxu0 0.0
    %722 = vmatprep.subr.mxu0 0.0
    %723 = vmatpush1.msra.mxu0 0.0
    %724 = vmatprep.subr.mxu0 0.0
    %725 = vmatpush1.msra.mxu0 0.0
    %726 = vmatprep.subr.mxu0 0.0
    %727 = vmatpush1.msra.mxu0 0.0
    %728 = vmatprep.subr.mxu0 0.0
    %729 = vmatpush1.msra.mxu0 0.0
    %730 = vmatprep.subr.mxu0 0.0
    %731 = vmatpush1.msra.mxu0 0.0
    %732 = vmatprep.subr.mxu0 0.0
    %733 = vmatpush1.msra.mxu0 0.0
    %734 = vmatprep.subr.mxu0 0.0
    %735 = vmatpush1.msra.mxu0 0.0
    %736 = vmatprep.subr.mxu0 0.0
    %737 = vmatpush1.msra.mxu0 0.0
    %738 = vmatprep.subr.mxu0 0.0
    %739 = vmatpush1.msra.mxu0 0.0
    %740 = vmatprep.subr.mxu0 0.0
    %741 = vmatpush1.msra.mxu0 0.0
    %742 = vmatprep.subr.mxu0 0.0
    %743 = vmatpush1.msra.mxu0 0.0
    %744 = vmatprep.mubr.f32.mxu0 0.0
    %745 = vmatmul.mubr.f32.gmra.mrb[0].mxu0 %v679
    %v746 = vpop.f32.mrb[0].mxu0
    %v747 = vadd.f32 0.0, %v746
    %v748 = vpop.f32.mrb[0].mxu0
    %749 = vdwg.mxu0
    %v751 = vrot.slane %v747, 6
    %v753 = vadd.f32 %v168, %v751
    %v754 = vxor.u32 %v753, 2147483648
    %v755 = vmul.f32 %v754, 1.442695
    %v756 = vpow.pop %v755
    %v757 = vadd.f32 %v756, 1.0
    %v758 = vrcp.pop %v757
    %v759 = vmul.f32 1.0, %v758
    %760 = vrot.lane.b32.xlu0 %v747, 64
    %v761 = vpop.permute.xlu0 %760
    %v762 = vadd.f32 %v761, %v276
    %v764 = vrot.slane %v762, 6
    %v766 = vmul.f32 %v759, %v764
    %v767 = vadd.f32 %v174, %v766
    %v768 = vtanh.pop %v767
    %v770 = vrot.slane %v759, 2
    %772 = vrot.lane.b32.xlu0 %v770, 96
    %v773 = vpop.permute.xlu0 %772
    %v774 = vsub.f32 1.0, %v773
    %v776 = vrot.slane %v768, 2
    %v778 = vmul.f32 %v774, %v776
    %v779 = vmul.f32 %v773, %v679
    %v780 = vadd.f32 %v778, %v779
    %781 = vmatprep.subr.mxu0 0.0
    %782 = vmatpush1.msra.mxu0 %v175
    %783 = vmatprep.subr.mxu0 0.0
    %784 = vmatpush1.msra.mxu0 %v176
    %785 = vmatprep.subr.mxu0 0.0
    %786 = vmatpush1.msra.mxu0 %v177
    %787 = vmatprep.subr.mxu0 0.0
    %788 = vmatpush1.msra.mxu0 %v178
    %789 = vmatprep.subr.mxu0 0.0
    %790 = vmatpush1.msra.mxu0 %v179
    %791 = vmatprep.subr.mxu0 0.0
    %792 = vmatpush1.msra.mxu0 %v180
    %793 = vmatprep.subr.mxu0 0.0
    %794 = vmatpush1.msra.mxu0 %v181
    %795 = vmatprep.subr.mxu0 0.0
    %796 = vmatpush1.msra.mxu0 %v182
    %797 = vmatprep.subr.mxu0 0.0
    %798 = vmatpush1.msra.mxu0 %v183
    %799 = vmatprep.subr.mxu0 0.0
    %800 = vmatpush1.msra.mxu0 %v184
    %801 = vmatprep.subr.mxu0 0.0
    %802 = vmatpush1.msra.mxu0 %v185
    %803 = vmatprep.subr.mxu0 0.0
    %804 = vmatpush1.msra.mxu0 %v186
    %805 = vmatprep.subr.mxu0 0.0
    %806 = vmatpush1.msra.mxu0 %v187
    %807 = vmatprep.subr.mxu0 0.0
    %808 = vmatpush1.msra.mxu0 %v188
    %809 = vmatprep.subr.mxu0 0.0
    %810 = vmatpush1.msra.mxu0 %v189
    %811 = vmatprep.subr.mxu0 0.0
    %812 = vmatpush1.msra.mxu0 %v190
    %813 = vmatprep.subr.mxu0 0.0
    %814 = vmatpush1.msra.mxu0 0.0
    %815 = vmatprep.subr.mxu0 0.0
    %816 = vmatpush1.msra.mxu0 0.0
    %817 = vmatprep.subr.mxu0 0.0
    %818 = vmatpush1.msra.mxu0 0.0
    %819 = vmatprep.subr.mxu0 0.0
    %820 = vmatpush1.msra.mxu0 0.0
    %821 = vmatprep.subr.mxu0 0.0
    %822 = vmatpush1.msra.mxu0 0.0
    %823 = vmatprep.subr.mxu0 0.0
    %824 = vmatpush1.msra.mxu0 0.0
    %825 = vmatprep.subr.mxu0 0.0
    %826 = vmatpush1.msra.mxu0 0.0
    %827 = vmatprep.subr.mxu0 0.0
    %828 = vmatpush1.msra.mxu0 0.0
    %829 = vmatprep.subr.mxu0 0.0
    %830 = vmatpush1.msra.mxu0 0.0
    %831 = vmatprep.subr.mxu0 0.0
    %832 = vmatpush1.msra.mxu0 0.0
    %833 = vmatprep.subr.mxu0 0.0
    %834 = vmatpush1.msra.mxu0 0.0
    %835 = vmatprep.subr.mxu0 0.0
    %836 = vmatpush1.msra.mxu0 0.0
    %837 = vmatprep.subr.mxu0 0.0
    %838 = vmatpush1.msra.mxu0 0.0
    %839 = vmatprep.subr.mxu0 0.0
    %840 = vmatpush1.msra.mxu0 0.0
    %841 = vmatprep.subr.mxu0 0.0
    %842 = vmatpush1.msra.mxu0 0.0
    %843 = vmatprep.subr.mxu0 0.0
    %844 = vmatpush1.msra.mxu0 0.0
    %845 = vmatprep.mubr.f32.mxu0 0.0
    %846 = vmatmul.mubr.f32.gmra.mrb[0].mxu0 %v780
    %v847 = vpop.f32.mrb[0].mxu0
    %v848 = vadd.f32 0.0, %v847
    %v849 = vpop.f32.mrb[0].mxu0
    %850 = vdwg.mxu0
    %v852 = vrot.slane %v848, 4
    %v854 = vadd.f32 %v168, %v852
    %v855 = vxor.u32 %v854, 2147483648
    %v856 = vmul.f32 %v855, 1.442695
    %v857 = vpow.pop %v856
    %v858 = vadd.f32 %v857, 1.0
    %v859 = vrcp.pop %v858
    %v860 = vmul.f32 1.0, %v859
    %861 = vrot.lane.b32.xlu0 %v848, 64
    %v862 = vpop.permute.xlu0 %861
    %v863 = vadd.f32 %v862, %v276
    %v865 = vrot.slane %v863, 4
    %v867 = vmul.f32 %v860, %v865
    %v868 = vadd.f32 %v174, %v867
    %v869 = vtanh.pop %v868
    %v871 = vrot.slane %v860, 4
    %873 = vrot.lane.b32.xlu0 %v871, 96
    %v874 = vpop.permute.xlu0 %873
    %v875 = vsub.f32 1.0, %v874
    %v877 = vrot.slane %v869, 4
    %v879 = vmul.f32 %v875, %v877
    %v880 = vmul.f32 %v874, %v780
    %v881 = vadd.f32 %v879, %v880
    %882 = vmatprep.subr.mxu0 0.0
    %883 = vmatpush1.msra.mxu0 %v175
    %884 = vmatprep.subr.mxu0 0.0
    %885 = vmatpush1.msra.mxu0 %v176
    %886 = vmatprep.subr.mxu0 0.0
    %887 = vmatpush1.msra.mxu0 %v177
    %888 = vmatprep.subr.mxu0 0.0
    %889 = vmatpush1.msra.mxu0 %v178
    %890 = vmatprep.subr.mxu0 0.0
    %891 = vmatpush1.msra.mxu0 %v179
    %892 = vmatprep.subr.mxu0 0.0
    %893 = vmatpush1.msra.mxu0 %v180
    %894 = vmatprep.subr.mxu0 0.0
    %895 = vmatpush1.msra.mxu0 %v181
    %896 = vmatprep.subr.mxu0 0.0
    %897 = vmatpush1.msra.mxu0 %v182
    %898 = vmatprep.subr.mxu0 0.0
    %899 = vmatpush1.msra.mxu0 %v183
    %900 = vmatprep.subr.mxu0 0.0
    %901 = vmatpush1.msra.mxu0 %v184
    %902 = vmatprep.subr.mxu0 0.0
    %903 = vmatpush1.msra.mxu0 %v185
    %904 = vmatprep.subr.mxu0 0.0
    %905 = vmatpush1.msra.mxu0 %v186
    %906 = vmatprep.subr.mxu0 0.0
    %907 = vmatpush1.msra.mxu0 %v187
    %908 = vmatprep.subr.mxu0 0.0
    %909 = vmatpush1.msra.mxu0 %v188
    %910 = vmatprep.subr.mxu0 0.0
    %911 = vmatpush1.msra.mxu0 %v189
    %912 = vmatprep.subr.mxu0 0.0
    %913 = vmatpush1.msra.mxu0 %v190
    %914 = vmatprep.subr.mxu0 0.0
    %915 = vmatpush1.msra.mxu0 0.0
    %916 = vmatprep.subr.mxu0 0.0
    %917 = vmatpush1.msra.mxu0 0.0
    %918 = vmatprep.subr.mxu0 0.0
    %919 = vmatpush1.msra.mxu0 0.0
    %920 = vmatprep.subr.mxu0 0.0
    %921 = vmatpush1.msra.mxu0 0.0
    %922 = vmatprep.subr.mxu0 0.0
    %923 = vmatpush1.msra.mxu0 0.0
    %924 = vmatprep.subr.mxu0 0.0
    %925 = vmatpush1.msra.mxu0 0.0
    %926 = vmatprep.subr.mxu0 0.0
    %927 = vmatpush1.msra.mxu0 0.0
    %928 = vmatprep.subr.mxu0 0.0
    %929 = vmatpush1.msra.mxu0 0.0
    %930 = vmatprep.subr.mxu0 0.0
    %931 = vmatpush1.msra.mxu0 0.0
    %932 = vmatprep.subr.mxu0 0.0
    %933 = vmatpush1.msra.mxu0 0.0
    %934 = vmatprep.subr.mxu0 0.0
    %935 = vmatpush1.msra.mxu0 0.0
    %936 = vmatprep.subr.mxu0 0.0
    %937 = vmatpush1.msra.mxu0 0.0
    %938 = vmatprep.subr.mxu0 0.0
    %939 = vmatpush1.msra.mxu0 0.0
    %940 = vmatprep.subr.mxu0 0.0
    %941 = vmatpush1.msra.mxu0 0.0
    %942 = vmatprep.subr.mxu0 0.0
    %943 = vmatpush1.msra.mxu0 0.0
    %944 = vmatprep.subr.mxu0 0.0
    %945 = vmatpush1.msra.mxu0 0.0
    %946 = vmatprep.mubr.f32.mxu0 0.0
    %947 = vmatmul.mubr.f32.gmra.mrb[0].mxu0 %v881
    %v948 = vpop.f32.mrb[0].mxu0
    %v949 = vadd.f32 0.0, %v948
    %v950 = vpop.f32.mrb[0].mxu0
    %951 = vdwg.mxu0
    %v953 = vrot.slane %v949, 2
    %v955 = vadd.f32 %v168, %v953
    %v956 = vxor.u32 %v955, 2147483648
    %v957 = vmul.f32 %v956, 1.442695
    %v958 = vpow.pop %v957
    %v959 = vadd.f32 %v958, 1.0
    %v960 = vrcp.pop %v959
    %v961 = vmul.f32 1.0, %v960
    %962 = vrot.lane.b32.xlu0 %v949, 64
    %v963 = vpop.permute.xlu0 %962
    %v964 = vadd.f32 %v963, %v276
    %v966 = vrot.slane %v964, 2
    %v968 = vmul.f32 %v961, %v966
    %v969 = vadd.f32 %v174, %v968
    %v970 = vtanh.pop %v969
    %v972 = vrot.slane %v961, 6
    %974 = vrot.lane.b32.xlu0 %v972, 96
    %v975 = vpop.permute.xlu0 %974
    %v976 = vsub.f32 1.0, %v975
    %v978 = vrot.slane %v970, 6
    %v980 = vmul.f32 %v976, %v978
    %v981 = vmul.f32 %v975, %v881
    %v982 = vadd.f32 %v980, %v981
    %vm983 = vcmask 254976
    %984 = vst.msk [vmem:[#allocation7] sm:$0x3] %vm983, %v982
    %v986 = vrot.slane %v388, 6
    %v989 = vrot.slane %v489, 4
    %v992 = vrot.slane %v590, 2
    %v995 = vrot.slane %v780, 6
    %v998 = vrot.slane %v881, 4
    %v1001 = vrot.slane %v982, 2
    %vm1003 = vcmask 1041408
    %v1004 = vsel %vm1003, %v287, %v986
    %vm1005 = vcmask 1043456
    %v1006 = vsel %vm1005, %v1004, %v989
    %vm1007 = vcmask 1045504
    %v1008 = vsel %vm1007, %v1006, %v992
    %v1009 = vsel %vm1003, %v679, %v995
    %v1010 = vsel %vm1005, %v1009, %v998
    %v1011 = vsel %vm1007, %v1010, %v1001
    %v1012 = vld [vmem:[#allocation5] sm:$0xff]
    %v1013 = vld [vmem:[#allocation5 + $0x8] sm:$0xff]
    %v1014 = vld [vmem:[#allocation5 + $0x10] sm:$0xff]
    %v1015 = vld [vmem:[#allocation5 + $0x18] sm:$0xff]
    %v1016 = vld [vmem:[#allocation5 + $0x20] sm:$0xff]
    %v1017 = vld [vmem:[#allocation5 + $0x28] sm:$0xff]
    %v1018 = vld [vmem:[#allocation5 + $0x30] sm:$0xff]
    %v1019 = vld [vmem:[#allocation5 + $0x38] sm:$0xff]
    %v1020 = vld [vmem:[#allocation5 + $0x40] sm:$0xff]
    %v1021 = vld [vmem:[#allocation5 + $0x48] sm:$0xff]
    %v1022 = vld [vmem:[#allocation5 + $0x50] sm:$0xff]
    %v1023 = vld [vmem:[#allocation5 + $0x58] sm:$0xff]
    %v1024 = vld [vmem:[#allocation5 + $0x60] sm:$0xff]
    %v1025 = vld [vmem:[#allocation5 + $0x68] sm:$0xff]
    %v1026 = vld [vmem:[#allocation5 + $0x70] sm:$0xff]
    %v1027 = vld [vmem:[#allocation5 + $0x78] sm:$0xff]
    %v1028 = vld [vmem:[%s7] sm:$0x1]
    %v1030 = vlaneseq
    %v1031 = vshrl.u32 %v1030, 7
    %v1032 = vsub.s32 0, %v1031
    %v1033 = vrot.slane %v1028, %v1032
    %1035 = vmatprep.subr.mxu0 0.0
    %1036 = vmatpush1.msra.mxu0 %v1012
    %1037 = vmatprep.subr.mxu0 0.0
    %1038 = vmatpush1.msra.mxu0 %v1013
    %1039 = vmatprep.subr.mxu0 0.0
    %1040 = vmatpush1.msra.mxu0 %v1014
    %1041 = vmatprep.subr.mxu0 0.0
    %1042 = vmatpush1.msra.mxu0 %v1015
    %1043 = vmatprep.subr.mxu0 0.0
    %1044 = vmatpush1.msra.mxu0 %v1016
    %1045 = vmatprep.subr.mxu0 0.0
    %1046 = vmatpush1.msra.mxu0 %v1017
    %1047 = vmatprep.subr.mxu0 0.0
    %1048 = vmatpush1.msra.mxu0 %v1018
    %1049 = vmatprep.subr.mxu0 0.0
    %1050 = vmatpush1.msra.mxu0 %v1019
    %1051 = vmatprep.subr.mxu0 0.0
    %1052 = vmatpush1.msra.mxu0 %v1020
    %1053 = vmatprep.subr.mxu0 0.0
    %1054 = vmatpush1.msra.mxu0 %v1021
    %1055 = vmatprep.subr.mxu0 0.0
    %1056 = vmatpush1.msra.mxu0 %v1022
    %1057 = vmatprep.subr.mxu0 0.0
    %1058 = vmatpush1.msra.mxu0 %v1023
    %1059 = vmatprep.subr.mxu0 0.0
    %1060 = vmatpush1.msra.mxu0 %v1024
    %1061 = vmatprep.subr.mxu0 0.0
    %1062 = vmatpush1.msra.mxu0 %v1025
    %1063 = vmatprep.subr.mxu0 0.0
    %1064 = vmatpush1.msra.mxu0 %v1026
    %1065 = vmatprep.subr.mxu0 0.0
    %1066 = vmatpush1.msra.mxu0 %v1027
    %1067 = vmatprep.subr.mxu0 0.0
    %1068 = vmatpush1.msra.mxu0 0.0
    %1069 = vmatprep.subr.mxu0 0.0
    %1070 = vmatpush1.msra.mxu0 0.0
    %1071 = vmatprep.subr.mxu0 0.0
    %1072 = vmatpush1.msra.mxu0 0.0
    %1073 = vmatprep.subr.mxu0 0.0
    %1074 = vmatpush1.msra.mxu0 0.0
    %1075 = vmatprep.subr.mxu0 0.0
    %1076 = vmatpush1.msra.mxu0 0.0
    %1077 = vmatprep.subr.mxu0 0.0
    %1078 = vmatpush1.msra.mxu0 0.0
    %1079 = vmatprep.subr.mxu0 0.0
    %1080 = vmatpush1.msra.mxu0 0.0
    %1081 = vmatprep.subr.mxu0 0.0
    %1082 = vmatpush1.msra.mxu0 0.0
    %1083 = vmatprep.subr.mxu0 0.0
    %1084 = vmatpush1.msra.mxu0 0.0
    %1085 = vmatprep.subr.mxu0 0.0
    %1086 = vmatpush1.msra.mxu0 0.0
    %1087 = vmatprep.subr.mxu0 0.0
    %1088 = vmatpush1.msra.mxu0 0.0
    %1089 = vmatprep.subr.mxu0 0.0
    %1090 = vmatpush1.msra.mxu0 0.0
    %1091 = vmatprep.subr.mxu0 0.0
    %1092 = vmatpush1.msra.mxu0 0.0
    %1093 = vmatprep.subr.mxu0 0.0
    %1094 = vmatpush1.msra.mxu0 0.0
    %1095 = vmatprep.subr.mxu0 0.0
    %1096 = vmatpush1.msra.mxu0 0.0
    %1097 = vmatprep.subr.mxu0 0.0
    %1098 = vmatpush1.msra.mxu0 0.0
    %1099 = vmatprep.mubr.f32.mxu0 0.0
    %1100 = vmatmul.mubr.f32.gmra.mrb[0].mxu0 %v1008
    %v1101 = vpop.f32.mrb[0].mxu0
    %v1102 = vadd.f32 %v1033, %v1101
    %v1103 = vpop.f32.mrb[0].mxu0
    %1104 = vmatprep.mubr.f32.mxu0 0.0
    %1105 = vmatmul.mubr.f32.gmra.mrb[0].mxu0 %v1011
    %v1106 = vpop.f32.mrb[0].mxu0
    %v1107 = vadd.f32 %v1033, %v1106
    %v1108 = vpop.f32.mrb[0].mxu0
    %1109 = vdwg.mxu0
    %1110 = vst [vmem:[%s8] sm:$0xff] %v1102
    %1111 = vst [vmem:[%s8 + $0x8] sm:$0xff] %v1107
    // Predicated region
    $region42: #{_gru_model_forward.1} parent=1 // pred_check
      _
    $region43: #{_gru_model_forward.1} parent=1 // pred_check_branch
      %1113 = sbr.rel (0) target = $region45
    $region44: #{_gru_model_forward.1} parent=1 // pred_region
      _
    $region45: #{_gru_model_forward.1} parent=1 // pred_fallthru
      _
    // Predicated region
    $region46: #{_gru_model_forward.1} parent=1 // pred_check
      _
    $region47: #{_gru_model_forward.1} parent=1 // pred_check_branch
      %1115 = sbr.rel (0) target = $region49
    $region48: #{_gru_model_forward.1} parent=1 // pred_region
      %s1117 = ssub.s32 32, 32
      %1118 = vsyncadd [#allocation4], %s1117
      %s1120 = sshll.u32 [#allocation7], 4
      %s1121 = int_to_ptr.vmem [resolvable:$true] %s1120
      %1123 = dma.vmem_to_hbm [thread:$0]  %s1121, 32, %s9, [#allocation4]
    $region49: #{_gru_model_forward.1} parent=1 // pred_fallthru
      _
    // Predicated region
    $region50: #{_gru_model_forward.1} parent=1 // pred_check
      _
    $region51: #{_gru_model_forward.1} parent=1 // pred_check_branch
      %1125 = sbr.rel (0) target = $region53
    $region52: #{_gru_model_forward.1} parent=1 // pred_region
      _
    $region53: #{_gru_model_forward.1} parent=1 // pred_fallthru
      _
    // Predicated region
    $region54: #{_gru_model_forward.1} parent=1 // pred_check
      _
    $region55: #{_gru_model_forward.1} parent=1 // pred_check_branch
      %1127 = sbr.rel (0) target = $region57
    $region56: #{_gru_model_forward.1} parent=1 // pred_region
      %1128 = dma.done [#allocation4], 32
    $region57: #{_gru_model_forward.1} parent=1 // pred_fallthru
      _
    %1129 = vsyncpa [#allocation3], 1
    %1130 = vsyncpa [#allocation6], 1
    %1131 = vsyncpa [#allocation4], 1

</llo_original>
